<compile_context>
chip_gen: v7x
topology: tpu7x:2x2x1
jax: 0.10.0
libtpu: 0.0.40
codegen_flags: <defaults>
</compile_context>

<pallas_src>
import functools
import math

import jax
import jax.numpy as jnp
from jax.experimental import pallas as pl
from jax.experimental.pallas import tpu as pltpu


# ----------------------------- budgets / tiling ------------------------------

def _vmem_limit_bytes():
    """Per-generation scoped-VMEM budget (~3/4 of physical, capped)."""
    cap = 128 * 1024 * 1024
    try:
        info = pltpu.get_tpu_info()
        cap = int(getattr(info, "vmem_capacity_bytes", cap))
    except Exception:
        pass
    return max(32 * 1024 * 1024, min((cap * 3) // 4, 96 * 1024 * 1024))


_VMEM_LIMIT = _vmem_limit_bytes()
_BIG_TILES = _VMEM_LIMIT >= 64 * 1024 * 1024   # v5e / v6e (128 MiB physical)

_TM_CANDS = ((1024, 512, 256, 128, 64, 32, 16, 8) if _BIG_TILES
             else (512, 256, 128, 64, 32, 16, 8))
_TN_CANDS = (1024, 768, 512, 256, 128)
_TK_CANDS = (1024, 768, 512, 256, 128)


def _pick_tile(dim, candidates):
    """Largest candidate that evenly divides `dim`, else the full dim."""
    for c in candidates:
        if c <= dim and dim % c == 0:
            return c
    return dim


def _gelu_tanh(x):
    c = jnp.float32(math.sqrt(2.0 / math.pi))
    return 0.5 * x * (1.0 + jnp.tanh(c * (x + 0.044715 * x * x * x)))


# ----------------------------- Pallas kernels --------------------------------

def _linear_kernel(x_ref, w_ref, b_ref, o_ref, acc_ref):
    """Plain tiled x @ w + b; grid axis 2 is the K reduction."""
    @pl.when(pl.program_id(2) == 0)
    def _init():
        acc_ref[...] = jnp.zeros_like(acc_ref)

    acc_ref[...] += jnp.dot(x_ref[...], w_ref[...],
                            preferred_element_type=jnp.float32)

    @pl.when(pl.program_id(2) == pl.num_programs(2) - 1)
    def _finalize():
        o_ref[...] = (acc_ref[...] + b_ref[...]).astype(o_ref.dtype)


def _linear_res_ln_kernel(x_ref, w_ref, b_ref, r_ref, g_ref, be_ref,
                          o_ref, acc_ref, *, eps):
    """x @ w + b, then residual add + LayerNorm fused into the K finalize.

    The output tile spans the FULL hidden dimension (tn == H), so the whole
    row is in the f32 accumulator at the last K step.
    """
    @pl.when(pl.program_id(1) == 0)
    def _init():
        acc_ref[...] = jnp.zeros_like(acc_ref)

    acc_ref[...] += jnp.dot(x_ref[...], w_ref[...],
                            preferred_element_type=jnp.float32)

    @pl.when(pl.program_id(1) == pl.num_programs(1) - 1)
    def _finalize():
        y = acc_ref[...] + b_ref[...] + r_ref[...].astype(jnp.float32)
        mean = jnp.mean(y, axis=-1, keepdims=True)
        d = y - mean
        var = jnp.mean(d * d, axis=-1, keepdims=True)
        z = d * jax.lax.rsqrt(var + eps)
        o_ref[...] = (z * g_ref[...] + be_ref[...]).astype(o_ref.dtype)


def _ffn_res_ln_kernel(x_ref, w1_ref, b1_ref, w2_ref, b2_ref, r_ref,
                       g_ref, be_ref, o_ref, acc_ref, *, eps):
    """Fused FFN: (GELU(x@w1+b1))@w2 + b2 + residual, then LayerNorm.

    Grid axis 1 tiles the FFN dimension; the GELU activation chunk stays in
    VMEM and is immediately contracted against the matching w2 slice.
    """
    j = pl.program_id(1)

    @pl.when(j == 0)
    def _init():
        acc_ref[...] = jnp.zeros_like(acc_ref)

    h1 = jnp.dot(x_ref[...], w1_ref[...],
                 preferred_element_type=jnp.float32) + b1_ref[...]
    h1 = _gelu_tanh(h1)
    acc_ref[...] += jnp.dot(h1.astype(jnp.bfloat16), w2_ref[...],
                            preferred_element_type=jnp.float32)

    @pl.when(j == pl.num_programs(1) - 1)
    def _finalize():
        y = acc_ref[...] + b2_ref[...] + r_ref[...].astype(jnp.float32)
        mean = jnp.mean(y, axis=-1, keepdims=True)
        d = y - mean
        var = jnp.mean(d * d, axis=-1, keepdims=True)
        z = d * jax.lax.rsqrt(var + eps)
        o_ref[...] = (z * g_ref[...] + be_ref[...]).astype(o_ref.dtype)


def _layernorm_kernel(x_ref, g_ref, b_ref, o_ref, *, eps):
    x = x_ref[...].astype(jnp.float32)
    mean = jnp.mean(x, axis=-1, keepdims=True)
    d = x - mean
    var = jnp.mean(d * d, axis=-1, keepdims=True)
    y = d * jax.lax.rsqrt(var + eps)
    o_ref[...] = (y * g_ref[...] + b_ref[...]).astype(o_ref.dtype)


def _flash_attn_kernel(q_ref, k_ref, v_ref, mask_ref, o_ref,
                       m_sc, l_sc, acc_sc, *,
                       group, hd, q_off, k_off, v_off, scale):
    """Flash attention for one (batch, head-group, q-tile) over kv tiles.

    q_ref  : [1, tq , W] bf16   (W = group*hd when lane-aligned, else 3H)
    k_ref  : [1, tkv, W] bf16
    v_ref  : [1, tkv, W] bf16
    mask_ref: [1, 1, tkv] f32   (1 = keep, 0 = pad)
    o_ref  : [1, tq, group*hd] bf16
    """
    ki = pl.program_id(3)

    @pl.when(ki == 0)
    def _init():
        m_sc[...] = jnp.full_like(m_sc, -1e30)
        l_sc[...] = jnp.zeros_like(l_sc)
        acc_sc[...] = jnp.zeros_like(acc_sc)

    # Additive key mask, built once per step and hoisted out of the head loop.
    kmask = (1.0 - mask_ref[0].astype(jnp.float32)) * jnp.float32(-10000.0)

    for h in range(group):                      # small static unroll (<= 2 typ.)
        q = q_ref[0, :, q_off + h * hd: q_off + (h + 1) * hd]     # [tq , hd]
        k = k_ref[0, :, k_off + h * hd: k_off + (h + 1) * hd]     # [tkv, hd]
        v = v_ref[0, :, v_off + h * hd: v_off + (h + 1) * hd]     # [tkv, hd]

        s = jax.lax.dot_general(q, k, (((1,), (1,)), ((), ())),
                                preferred_element_type=jnp.float32)
        s = s * jnp.float32(scale) + kmask                        # [tq, tkv]

        m_prev = m_sc[h]                                          # [tq, 1]
        m_new = jnp.maximum(m_prev, jnp.max(s, axis=-1, keepdims=True))
        alpha = jnp.exp(m_prev - m_new)
        p = jnp.exp(s - m_new)

        l_sc[h] = alpha * l_sc[h] + jnp.sum(p, axis=-1, keepdims=True)
        sl = slice(h * hd, (h + 1) * hd)
        acc_sc[:, sl] = (alpha * acc_sc[:, sl]
                         + jnp.dot(p.astype(jnp.bfloat16), v,
                                   preferred_element_type=jnp.float32))
        m_sc[h] = m_new

    @pl.when(ki == pl.num_programs(3) - 1)
    def _finalize():
        for h in range(group):
            sl = slice(h * hd, (h + 1) * hd)
            acc_sc[:, sl] = acc_sc[:, sl] * pl.reciprocal(l_sc[h], approx=True)
        o_ref[0] = acc_sc[...].astype(o_ref.dtype)                # lane-dense store


# ----------------------------- Pallas wrappers --------------------------------

def pallas_linear(x, w, b, out_dtype=jnp.bfloat16):
    """Tiled, pipelined x @ w + b. bf16 in, f32 accumulate."""
    x = x.astype(jnp.bfloat16)
    w = w.astype(jnp.bfloat16)
    M, K = x.shape
    N = w.shape[1]

    tm = _pick_tile(M, _TM_CANDS)
    tn = _pick_tile(N, _TN_CANDS)
    tk = _pick_tile(K, _TK_CANDS)

    return pl.pallas_call(
        _linear_kernel,
        out_shape=jax.ShapeDtypeStruct((M, N), out_dtype),
        grid=(M // tm, N // tn, K // tk),
        in_specs=[pl.BlockSpec((tm, tk), lambda i, j, k: (i, k)),
                  pl.BlockSpec((tk, tn), lambda i, j, k: (k, j)),
                  pl.BlockSpec((1, tn), lambda i, j, k: (0, j))],
        out_specs=pl.BlockSpec((tm, tn), lambda i, j, k: (i, j)),
        scratch_shapes=[pltpu.VMEM((tm, tn), jnp.float32)],
        compiler_params=pltpu.CompilerParams(
            dimension_semantics=("parallel", "parallel", "arbitrary"),
            vmem_limit_bytes=_VMEM_LIMIT),
    )(x, w, b.astype(jnp.float32).reshape(1, N))


def pallas_linear_res_ln(x, w, b, residual, gamma, beta, eps=1e-12,
                         out_dtype=jnp.bfloat16):
    """LayerNorm(residual + x @ w + b), with the add+LN fused into the finalize."""
    x = x.astype(jnp.bfloat16)
    w = w.astype(jnp.bfloat16)
    M, K = x.shape
    N = w.shape[1]

    tm = _pick_tile(M, _TM_CANDS)
    tk = _pick_tile(K, _TK_CANDS)

    kern = functools.partial(_linear_res_ln_kernel, eps=eps)
    return pl.pallas_call(
        kern,
        out_shape=jax.ShapeDtypeStruct((M, N), out_dtype),
        grid=(M // tm, K // tk),
        in_specs=[pl.BlockSpec((tm, tk), lambda i, k: (i, k)),
                  pl.BlockSpec((tk, N), lambda i, k: (k, 0)),
                  pl.BlockSpec((1, N), lambda i, k: (0, 0)),
                  pl.BlockSpec((tm, N), lambda i, k: (i, 0)),
                  pl.BlockSpec((1, N), lambda i, k: (0, 0)),
                  pl.BlockSpec((1, N), lambda i, k: (0, 0))],
        out_specs=pl.BlockSpec((tm, N), lambda i, k: (i, 0)),
        scratch_shapes=[pltpu.VMEM((tm, N), jnp.float32)],
        compiler_params=pltpu.CompilerParams(
            dimension_semantics=("parallel", "arbitrary"),
            vmem_limit_bytes=_VMEM_LIMIT),
    )(x, w, b.astype(jnp.float32).reshape(1, N),
      residual.astype(jnp.bfloat16),
      gamma.astype(jnp.float32).reshape(1, N),
      beta.astype(jnp.float32).reshape(1, N))


def pallas_ffn_res_ln(x, w1, b1, w2, b2, residual, gamma, beta, eps=1e-12,
                      out_dtype=jnp.bfloat16):
    """LayerNorm(residual + GELU(x@w1+b1)@w2 + b2) in one fused kernel."""
    x = x.astype(jnp.bfloat16)
    w1 = w1.astype(jnp.bfloat16)
    w2 = w2.astype(jnp.bfloat16)
    M, H = x.shape
    F = w1.shape[1]

    tm = _pick_tile(M, (256, 128, 64, 32, 16, 8))
    tf = _pick_tile(F, (512, 256, 128))

    kern = functools.partial(_ffn_res_ln_kernel, eps=eps)
    return pl.pallas_call(
        kern,
        out_shape=jax.ShapeDtypeStruct((M, H), out_dtype),
        grid=(M // tm, F // tf),
        in_specs=[pl.BlockSpec((tm, H), lambda i, j: (i, 0)),
                  pl.BlockSpec((H, tf), lambda i, j: (0, j)),
                  pl.BlockSpec((1, tf), lambda i, j: (0, j)),
                  pl.BlockSpec((tf, H), lambda i, j: (j, 0)),
                  pl.BlockSpec((1, H), lambda i, j: (0, 0)),
                  pl.BlockSpec((tm, H), lambda i, j: (i, 0)),
                  pl.BlockSpec((1, H), lambda i, j: (0, 0)),
                  pl.BlockSpec((1, H), lambda i, j: (0, 0))],
        out_specs=pl.BlockSpec((tm, H), lambda i, j: (i, 0)),
        scratch_shapes=[pltpu.VMEM((tm, H), jnp.float32)],
        compiler_params=pltpu.CompilerParams(
            dimension_semantics=("parallel", "arbitrary"),
            vmem_limit_bytes=_VMEM_LIMIT),
    )(x, w1, b1.astype(jnp.float32).reshape(1, F),
      w2, b2.astype(jnp.float32).reshape(1, H),
      residual.astype(jnp.bfloat16),
      gamma.astype(jnp.float32).reshape(1, H),
      beta.astype(jnp.float32).reshape(1, H))


def pallas_layernorm(x, gamma, beta, eps=1e-12, out_dtype=jnp.bfloat16):
    """Row-tiled LayerNorm (used once on the embeddings)."""
    M, H = x.shape
    tm = _pick_tile(M, _TM_CANDS)
    row_spec = pl.BlockSpec((tm, H), lambda i: (i, 0))
    vec_spec = pl.BlockSpec((1, H), lambda i: (0, 0))

    kern = functools.partial(_layernorm_kernel, eps=eps)
    return pl.pallas_call(
        kern,
        out_shape=jax.ShapeDtypeStruct((M, H), out_dtype),
        grid=(M // tm,),
        in_specs=[row_spec, vec_spec, vec_spec],
        out_specs=row_spec,
        compiler_params=pltpu.CompilerParams(
            dimension_semantics=("parallel",),
            vmem_limit_bytes=_VMEM_LIMIT),
    )(x, gamma.astype(jnp.float32).reshape(1, H),
      beta.astype(jnp.float32).reshape(1, H))


def pallas_flash_attention(qkv, mask_f, n_heads):
    """qkv: [B, S, 3H] bf16 ([Q|K|V] columns), mask_f: [B, 1, S] f32 -> [B, S, H]."""
    B, S, H3 = qkv.shape
    H = H3 // 3
    hd = H // n_heads
    scale = 1.0 / math.sqrt(hd)

    # Smallest head group whose lane width is a multiple of 128; else all heads.
    group = n_heads
    for g in range(1, n_heads + 1):
        if n_heads % g == 0 and (g * hd) % 128 == 0:
            group = g
            break
    ghd = group * hd
    G = n_heads // group

    tq = _pick_tile(S, (256, 128))
    tkv = _pick_tile(S, (512, 256, 128))

    if ghd % 128 == 0:
        # Lane-aligned head-group blocks sliced straight out of [B, S, 3H].
        cw = ghd
        q_map = lambda b, g, qi, ki: (b, qi, g)
        k_map = lambda b, g, qi, ki: (b, ki, (H // ghd) + g)
        v_map = lambda b, g, qi, ki: (b, ki, 2 * (H // ghd) + g)
        q_off, k_off, v_off = 0, 0, 0
    else:
        # Fallback (tiny H): single group over the full [., ., 3H] slab.
        cw = H3
        q_map = lambda b, g, qi, ki: (b, qi, 0)
        k_map = lambda b, g, qi, ki: (b, ki, 0)
        v_map = lambda b, g, qi, ki: (b, ki, 0)
        q_off, k_off, v_off = 0, H, 2 * H

    kern = functools.partial(_flash_attn_kernel, group=group, hd=hd,
                             q_off=q_off, k_off=k_off, v_off=v_off, scale=scale)
    return pl.pallas_call(
        kern,
        out_shape=jax.ShapeDtypeStruct((B, S, H), jnp.bfloat16),
        grid=(B, G, S // tq, S // tkv),
        in_specs=[pl.BlockSpec((1, tq, cw), q_map),
                  pl.BlockSpec((1, tkv, cw), k_map),
                  pl.BlockSpec((1, tkv, cw), v_map),
                  pl.BlockSpec((1, 1, tkv), lambda b, g, qi, ki: (b, 0, ki))],
        out_specs=pl.BlockSpec((1, tq, ghd), lambda b, g, qi, ki: (b, qi, g)),
        scratch_shapes=[pltpu.VMEM((group, tq, 1), jnp.float32),   # running max
                        pltpu.VMEM((group, tq, 1), jnp.float32),   # running sum
                        pltpu.VMEM((tq, ghd), jnp.float32)],       # context acc
        compiler_params=pltpu.CompilerParams(
            dimension_semantics=("parallel", "parallel", "parallel", "arbitrary"),
            vmem_limit_bytes=_VMEM_LIMIT),
    )(qkv, qkv, qkv, mask_f)


# --------------------------- parameter initialization -------------------------

def _xavier(key, shape):
    fan_in, fan_out = shape[0], shape[1]
    limit = math.sqrt(6.0 / (fan_in + fan_out))
    return jax.random.uniform(key, shape, jnp.float32, -limit, limit)


def make_params(key, *, vocab, type_vocab, max_pos, hidden, n_heads,
                n_layers, ffn):
    keys = jax.random.split(key, 3 + n_layers)
    params = {
        "word_emb": 0.02 * jax.random.normal(keys[0], (vocab, hidden), jnp.float32),
        "pos_emb": 0.02 * jax.random.normal(keys[1], (max_pos, hidden), jnp.float32),
        "type_emb": 0.02 * jax.random.normal(keys[2], (type_vocab, hidden), jnp.float32),
        "emb_ln_g": jnp.ones((hidden,), jnp.float32),
        "emb_ln_b": jnp.zeros((hidden,), jnp.float32),
        "layers": [],
    }
    for li in range(n_layers):
        lk = jax.random.split(keys[3 + li], 6)
        # Fused QKV weight: [H, 3H] = concat(Wq, Wk, Wv) along N.
        w_qkv = jnp.concatenate(
            [_xavier(lk[0], (hidden, hidden)),
             _xavier(lk[1], (hidden, hidden)),
             _xavier(lk[2], (hidden, hidden))], axis=1)
        params["layers"].append({
            "w_qkv": w_qkv.astype(jnp.bfloat16),
            "b_qkv": jnp.zeros((3 * hidden,), jnp.float32),
            "wo": _xavier(lk[3], (hidden, hidden)).astype(jnp.bfloat16),
            "bo": jnp.zeros((hidden,), jnp.float32),
            "ln1_g": jnp.ones((hidden,), jnp.float32),
            "ln1_b": jnp.zeros((hidden,), jnp.float32),
            "w1": _xavier(lk[4], (hidden, ffn)).astype(jnp.bfloat16),
            "b1": jnp.zeros((ffn,), jnp.float32),
            "w2": _xavier(lk[5], (ffn, hidden)).astype(jnp.bfloat16),
            "b2": jnp.zeros((hidden,), jnp.float32),
            "ln2_g": jnp.ones((hidden,), jnp.float32),
            "ln2_b": jnp.zeros((hidden,), jnp.float32),
        })
    return params


# -------------------------------- forward pass --------------------------------

def transformer_forward(params, x, segs, mask, *, n_heads):
    """Equivalent of Transformer.forward: returns top_vec = last hidden [B,S,H]."""
    B, S = x.shape
    H = params["word_emb"].shape[1]

    # Embeddings (gather is plain-JAX glue; normalization is a Pallas kernel).
    emb = (params["word_emb"][x]
           + params["pos_emb"][:S][None, :, :]
           + params["type_emb"][segs])
    h = pallas_layernorm(emb.reshape(B * S, H),
                         params["emb_ln_g"], params["emb_ln_b"])

    # Key mask [B, 1, S]; the additive (1-mask)*-1e4 form is built in-kernel.
    mask_f = mask.astype(jnp.float32).reshape(B, 1, S)

    for lyr in params["layers"]:
        # --- self attention: fused QKV projection + flash attention ---
        qkv = pallas_linear(h, lyr["w_qkv"], lyr["b_qkv"])             # [B*S, 3H]
        ctx = pallas_flash_attention(qkv.reshape(B, S, 3 * H), mask_f, n_heads)
        # wo projection + residual + LayerNorm, fused
        h = pallas_linear_res_ln(ctx.reshape(B * S, H), lyr["wo"], lyr["bo"],
                                 residual=h, gamma=lyr["ln1_g"], beta=lyr["ln1_b"])

        # --- feed forward: w1+GELU, w2, residual, LayerNorm all fused ---
        h = pallas_ffn_res_ln(h, lyr["w1"], lyr["b1"], lyr["w2"], lyr["b2"],
                              residual=h, gamma=lyr["ln2_g"], beta=lyr["ln2_b"])

    return h.reshape(B, S, H).astype(jnp.float32)   # top_vec


# ------------------------------------ main -------------------------------------

if __name__ == "__main__":
    # Small BERT-like config implied by the wrapped pretrained model.
    VOCAB, TYPE_VOCAB, MAX_POS = 64, 2, 16
    B, S, H, N_HEADS, N_LAYERS, FFN = 2, 8, 32, 2, 2, 64

    key = jax.random.PRNGKey(0)
    pkey, xkey, skey = jax.random.split(key, 3)

    params = make_params(pkey, vocab=VOCAB, type_vocab=TYPE_VOCAB,
                         max_pos=MAX_POS, hidden=H, n_heads=N_HEADS,
                         n_layers=N_LAYERS, ffn=FFN)

    x = jax.random.randint(xkey, (B, S), 0, VOCAB, dtype=jnp.int32)       # token ids
    segs = jax.random.randint(skey, (B, S), 0, TYPE_VOCAB, dtype=jnp.int32)
    lengths = jnp.array([S, 5], dtype=jnp.int32)
    mask = (jnp.arange(S)[None, :] < lengths[:, None]).astype(jnp.int32)  # [B, S]

    fwd = jax.jit(functools.partial(transformer_forward, n_heads=N_HEADS))
    top_vec = fwd(params, x, segs, mask)
    top_vec = jax.block_until_ready(top_vec)

    assert top_vec.shape == (B, S, H)
    assert jnp.all(jnp.isfinite(top_vec))
    print("KERNEL_OK")
</pallas_src>

<mosaic_0001>
module attributes {stable_mosaic.version = 11 : i64} {
  func.func @_layernorm_kernel(%arg0: i32, %arg1: memref<16x32xf32, #tpu.memory_space<vmem>>, %arg2: memref<1x32xf32, #tpu.memory_space<vmem>>, %arg3: memref<1x32xf32, #tpu.memory_space<vmem>>, %arg4: memref<16x32xbf16, #tpu.memory_space<vmem>>) attributes {dimension_semantics = [#tpu.dimension_semantics<parallel>], iteration_bounds = array<i64: 1>, scalar_prefetch = 0 : i64, scratch_operands = 0 : i64, tpu.core_type = #tpu.core_type<tc>, window_params = [{transform_indices = @transform_0, window_bounds = array<i64: 16, 32>}, {pipeline_mode = #tpu.pipeline_mode<synchronous>, transform_indices = @transform_1, window_bounds = array<i64: 1, 32>}, {pipeline_mode = #tpu.pipeline_mode<synchronous>, transform_indices = @transform_2, window_bounds = array<i64: 1, 32>}, {transform_indices = @transform_3, window_bounds = array<i64: 16, 32>}]} {
    %c0 = arith.constant 0 : index
    %c0_0 = arith.constant 0 : index
    %0 = vector.load %arg1[%c0, %c0_0] : memref<16x32xf32, #tpu.memory_space<vmem>>, vector<16x32xf32>
    %cst = arith.constant dense<0.000000e+00> : vector<16xf32>
    %1 = vector.multi_reduction <add>, %0, %cst [1] : vector<16x32xf32> to vector<16xf32>
    %2 = vector.shape_cast %1 : vector<16xf32> to vector<16x1xf32>
    %cst_1 = arith.constant 3.200000e+01 : f32
    %3 = vector.broadcast %cst_1 : f32 to vector<16x1xf32>
    %4 = arith.divf %2, %3 : vector<16x1xf32>
    %5 = vector.broadcast %4 : vector<16x1xf32> to vector<16x32xf32>
    %6 = arith.subf %0, %5 : vector<16x32xf32>
    %7 = arith.mulf %6, %6 : vector<16x32xf32>
    %cst_2 = arith.constant dense<0.000000e+00> : vector<16xf32>
    %8 = vector.multi_reduction <add>, %7, %cst_2 [1] : vector<16x32xf32> to vector<16xf32>
    %9 = vector.shape_cast %8 : vector<16xf32> to vector<16x1xf32>
    %cst_3 = arith.constant 3.200000e+01 : f32
    %10 = vector.broadcast %cst_3 : f32 to vector<16x1xf32>
    %11 = arith.divf %9, %10 : vector<16x1xf32>
    %cst_4 = arith.constant 9.99999996E-13 : f32
    %12 = vector.broadcast %cst_4 : f32 to vector<16x1xf32>
    %13 = arith.addf %11, %12 : vector<16x1xf32>
    %14 = math.rsqrt %13 : vector<16x1xf32>
    %15 = vector.broadcast %14 : vector<16x1xf32> to vector<16x32xf32>
    %16 = arith.mulf %6, %15 : vector<16x32xf32>
    %c0_5 = arith.constant 0 : index
    %c0_6 = arith.constant 0 : index
    %17 = vector.load %arg2[%c0_5, %c0_6] : memref<1x32xf32, #tpu.memory_space<vmem>>, vector<1x32xf32>
    %18 = vector.broadcast %17 : vector<1x32xf32> to vector<16x32xf32>
    %19 = arith.mulf %16, %18 : vector<16x32xf32>
    %c0_7 = arith.constant 0 : index
    %c0_8 = arith.constant 0 : index
    %20 = vector.load %arg3[%c0_7, %c0_8] : memref<1x32xf32, #tpu.memory_space<vmem>>, vector<1x32xf32>
    %21 = vector.broadcast %20 : vector<1x32xf32> to vector<16x32xf32>
    %22 = arith.addf %19, %21 : vector<16x32xf32>
    %23 = arith.truncf %22 : vector<16x32xf32> to vector<16x32xbf16>
    %c0_9 = arith.constant 0 : index
    %c0_10 = arith.constant 0 : index
    %24 = vector.load %arg4[%c0_9, %c0_10] : memref<16x32xbf16, #tpu.memory_space<vmem>>, vector<16x32xbf16>
    tpu.vector_store %arg4[%c0_9, %c0_10], %23 {strides = array<i32>} : memref<16x32xbf16, #tpu.memory_space<vmem>>, vector<16x32xbf16>,
    return
  }
  func.func @transform_0(%arg0: i32) -> (i32, i32) {
    %c0_i32 = arith.constant 0 : i32
    %c0_i32_0 = arith.constant 0 : i32
    return %arg0, %c0_i32 : i32, i32
  }
  func.func @transform_1(%arg0: i32) -> (i32, i32) {
    %c0_i32 = arith.constant 0 : i32
    %c0_i32_0 = arith.constant 0 : i32
    %c0_i32_1 = arith.constant 0 : i32
    return %c0_i32, %c0_i32_0 : i32, i32
  }
  func.func @transform_2(%arg0: i32) -> (i32, i32) {
    %c0_i32 = arith.constant 0 : i32
    %c0_i32_0 = arith.constant 0 : i32
    %c0_i32_1 = arith.constant 0 : i32
    return %c0_i32, %c0_i32_0 : i32, i32
  }
  func.func @transform_3(%arg0: i32) -> (i32, i32) {
    %c0_i32 = arith.constant 0 : i32
    %c0_i32_0 = arith.constant 0 : i32
    return %arg0, %c0_i32 : i32, i32
  }
}

module attributes {stable_mosaic.version = 11 : i64} {
  func.func @_linear_kernel(%arg0: i32, %arg1: i32, %arg2: i32, %arg3: memref<16x32xbf16, #tpu.memory_space<vmem>>, %arg4: memref<32x96xbf16, #tpu.memory_space<vmem>>, %arg5: memref<1x96xf32, #tpu.memory_space<vmem>>, %arg6: memref<16x96xbf16, #tpu.memory_space<vmem>>, %arg7: memref<16x96xf32, #tpu.memory_space<vmem>>) attributes {dimension_semantics = [#tpu.dimension_semantics<parallel>, #tpu.dimension_semantics<parallel>, #tpu.dimension_semantics<arbitrary>], iteration_bounds = array<i64: 1, 1, 1>, scalar_prefetch = 0 : i64, scratch_operands = 1 : i64, tpu.core_type = #tpu.core_type<tc>, window_params = [{transform_indices = @transform_0, window_bounds = array<i64: 16, 32>}, {transform_indices = @transform_1, window_bounds = array<i64: 32, 96>}, {transform_indices = @transform_2, window_bounds = array<i64: 1, 96>}, {transform_indices = @transform_3, window_bounds = array<i64: 16, 96>}]} {
    %c0_i32 = arith.constant 0 : i32
    %0 = arith.cmpi eq, %arg2, %c0_i32 : i32
    %1 = arith.extui %0 : i1 to i32
    %c0_i32_0 = arith.constant 0 : i32
    %2 = arith.cmpi ne, %1, %c0_i32_0 : i32
    scf.if %2 {
      %cst_10 = arith.constant 0.000000e+00 : f32
      %12 = vector.broadcast %cst_10 : f32 to vector<16x96xf32>
      %c0_11 = arith.constant 0 : index
      %c0_12 = arith.constant 0 : index
      %13 = vector.load %arg7[%c0_11, %c0_12] : memref<16x96xf32, #tpu.memory_space<vmem>>, vector<16x96xf32>
      tpu.vector_store %arg7[%c0_11, %c0_12], %12 {strides = array<i32>} : memref<16x96xf32, #tpu.memory_space<vmem>>, vector<16x96xf32>,
    } else {
    }
    %c0 = arith.constant 0 : index
    %c0_1 = arith.constant 0 : index
    %3 = vector.load %arg7[%c0, %c0_1] : memref<16x96xf32, #tpu.memory_space<vmem>>, vector<16x96xf32>
    %c0_2 = arith.constant 0 : index
    %c0_3 = arith.constant 0 : index
    %4 = vector.load %arg3[%c0_2, %c0_3] : memref<16x32xbf16, #tpu.memory_space<vmem>>, vector<16x32xbf16>
    %c0_4 = arith.constant 0 : index
    %c0_5 = arith.constant 0 : index
    %5 = vector.load %arg4[%c0_4, %c0_5] : memref<32x96xbf16, #tpu.memory_space<vmem>>, vector<32x96xbf16>
    %cst = arith.constant dense<0.000000e+00> : vector<16x96xf32>
    %6 = tpu.matmul %4, %5, %cst {dimension_numbers = #tpu.dot_dimension_numbers<[1], [0], [0], [1], [0, 0, 1, 1], [], []>} : vector<16x32xbf16>, vector<32x96xbf16>, vector<16x96xf32> -> vector<16x96xf32>
    %7 = arith.addf %3, %6 : vector<16x96xf32>
    %c0_6 = arith.constant 0 : index
    %c0_7 = arith.constant 0 : index
    %8 = vector.load %arg7[%c0_6, %c0_7] : memref<16x96xf32, #tpu.memory_space<vmem>>, vector<16x96xf32>
    tpu.vector_store %arg7[%c0_6, %c0_7], %7 {strides = array<i32>} : memref<16x96xf32, #tpu.memory_space<vmem>>, vector<16x96xf32>,
    %c0_i32_8 = arith.constant 0 : i32
    %9 = arith.cmpi eq, %arg2, %c0_i32_8 : i32
    %10 = arith.extui %9 : i1 to i32
    %c0_i32_9 = arith.constant 0 : i32
    %11 = arith.cmpi ne, %10, %c0_i32_9 : i32
    scf.if %11 {
      %c0_10 = arith.constant 0 : index
      %c0_11 = arith.constant 0 : index
      %12 = vector.load %arg7[%c0_10, %c0_11] : memref<16x96xf32, #tpu.memory_space<vmem>>, vector<16x96xf32>
      %c0_12 = arith.constant 0 : index
      %c0_13 = arith.constant 0 : index
      %13 = vector.load %arg5[%c0_12, %c0_13] : memref<1x96xf32, #tpu.memory_space<vmem>>, vector<1x96xf32>
      %14 = vector.broadcast %13 : vector<1x96xf32> to vector<16x96xf32>
      %15 = arith.addf %12, %14 : vector<16x96xf32>
      %16 = arith.truncf %15 : vector<16x96xf32> to vector<16x96xbf16>
      %c0_14 = arith.constant 0 : index
      %c0_15 = arith.constant 0 : index
      %17 = vector.load %arg6[%c0_14, %c0_15] : memref<16x96xbf16, #tpu.memory_space<vmem>>, vector<16x96xbf16>
      tpu.vector_store %arg6[%c0_14, %c0_15], %16 {strides = array<i32>} : memref<16x96xbf16, #tpu.memory_space<vmem>>, vector<16x96xbf16>,
    } else {
    }
    return
  }
  func.func @transform_0(%arg0: i32, %arg1: i32, %arg2: i32) -> (i32, i32) {
    %c0_i32 = arith.constant 0 : i32
    return %arg0, %arg2 : i32, i32
  }
  func.func @transform_1(%arg0: i32, %arg1: i32, %arg2: i32) -> (i32, i32) {
    %c0_i32 = arith.constant 0 : i32
    return %arg2, %arg1 : i32, i32
  }
  func.func @transform_2(%arg0: i32, %arg1: i32, %arg2: i32) -> (i32, i32) {
    %c0_i32 = arith.constant 0 : i32
    %c0_i32_0 = arith.constant 0 : i32
    return %c0_i32, %arg1 : i32, i32
  }
  func.func @transform_3(%arg0: i32, %arg1: i32, %arg2: i32) -> (i32, i32) {
    %c0_i32 = arith.constant 0 : i32
    return %arg0, %arg1 : i32, i32
  }
}

module attributes {stable_mosaic.version = 11 : i64} {
  func.func @_flash_attn_kernel(%arg0: i32, %arg1: i32, %arg2: i32, %arg3: i32, %arg4: memref<1x8x96xbf16, #tpu.memory_space<vmem>>, %arg5: memref<1x8x96xbf16, #tpu.memory_space<vmem>>, %arg6: memref<1x8x96xbf16, #tpu.memory_space<vmem>>, %arg7: memref<1x1x8xf32, #tpu.memory_space<vmem>>, %arg8: memref<1x8x32xbf16, #tpu.memory_space<vmem>>, %arg9: memref<2x8x1xf32, #tpu.memory_space<vmem>>, %arg10: memref<2x8x1xf32, #tpu.memory_space<vmem>>, %arg11: memref<8x32xf32, #tpu.memory_space<vmem>>) attributes {dimension_semantics = [#tpu.dimension_semantics<parallel>, #tpu.dimension_semantics<parallel>, #tpu.dimension_semantics<parallel>, #tpu.dimension_semantics<arbitrary>], iteration_bounds = array<i64: 2, 1, 1, 1>, scalar_prefetch = 0 : i64, scratch_operands = 3 : i64, tpu.core_type = #tpu.core_type<tc>, window_params = [{transform_indices = @transform_0, window_bounds = array<i64: 1, 8, 96>}, {transform_indices = @transform_1, window_bounds = array<i64: 1, 8, 96>}, {transform_indices = @transform_2, window_bounds = array<i64: 1, 8, 96>}, {transform_indices = @transform_3, window_bounds = array<i64: 1, 1, 8>}, {transform_indices = @transform_4, window_bounds = array<i64: 1, 8, 32>}]} {
    %c0_i32 = arith.constant 0 : i32
    %0 = arith.cmpi eq, %arg3, %c0_i32 : i32
    %1 = arith.extui %0 : i1 to i32
    %c0_i32_0 = arith.constant 0 : i32
    %2 = arith.cmpi ne, %1, %c0_i32_0 : i32
    scf.if %2 {
      %cst_60 = arith.constant -1.000000e+30 : f32
      %92 = vector.broadcast %cst_60 : f32 to vector<2x8x1xf32>
      %c0_61 = arith.constant 0 : index
      %c0_62 = arith.constant 0 : index
      %c0_63 = arith.constant 0 : index
      %93 = vector.load %arg9[%c0_61, %c0_62, %c0_63] : memref<2x8x1xf32, #tpu.memory_space<vmem>>, vector<2x8x1xf32>
      tpu.vector_store %arg9[%c0_61, %c0_62, %c0_63], %92 {strides = array<i32>} : memref<2x8x1xf32, #tpu.memory_space<vmem>>, vector<2x8x1xf32>,
      %cst_64 = arith.constant 0.000000e+00 : f32
      %94 = vector.broadcast %cst_64 : f32 to vector<2x8x1xf32>
      %c0_65 = arith.constant 0 : index
      %c0_66 = arith.constant 0 : index
      %c0_67 = arith.constant 0 : index
      %95 = vector.load %arg10[%c0_65, %c0_66, %c0_67] : memref<2x8x1xf32, #tpu.memory_space<vmem>>, vector<2x8x1xf32>
      tpu.vector_store %arg10[%c0_65, %c0_66, %c0_67], %94 {strides = array<i32>} : memref<2x8x1xf32, #tpu.memory_space<vmem>>, vector<2x8x1xf32>,
      %cst_68 = arith.constant 0.000000e+00 : f32
      %96 = vector.broadcast %cst_68 : f32 to vector<8x32xf32>
      %c0_69 = arith.constant 0 : index
      %c0_70 = arith.constant 0 : index
      %97 = vector.load %arg11[%c0_69, %c0_70] : memref<8x32xf32, #tpu.memory_space<vmem>>, vector<8x32xf32>
      tpu.vector_store %arg11[%c0_69, %c0_70], %96 {strides = array<i32>} : memref<8x32xf32, #tpu.memory_space<vmem>>, vector<8x32xf32>,
    } else {
    }
    %c0 = arith.constant 0 : index
    %c0_1 = arith.constant 0 : index
    %c0_2 = arith.constant 0 : index
    %3 = vector.load %arg7[%c0, %c0_1, %c0_2] : memref<1x1x8xf32, #tpu.memory_space<vmem>>, vector<1x1x8xf32>
    %4 = vector.shape_cast %3 : vector<1x1x8xf32> to vector<1x8xf32>
    %cst = arith.constant 1.000000e+00 : f32
    %5 = vector.broadcast %cst : f32 to vector<1x8xf32>
    %6 = arith.subf %5, %4 : vector<1x8xf32>
    %cst_3 = arith.constant -1.000000e+04 : f32
    %7 = vector.broadcast %cst_3 : f32 to vector<1x8xf32>
    %8 = arith.mulf %6, %7 : vector<1x8xf32>
    %c0_4 = arith.constant 0 : index
    %c0_5 = arith.constant 0 : index
    %c0_6 = arith.constant 0 : index
    %9 = vector.load %arg4[%c0_4, %c0_5, %c0_6] : memref<1x8x96xbf16, #tpu.memory_space<vmem>>, vector<1x8x16xbf16>
    %10 = vector.shape_cast %9 : vector<1x8x16xbf16> to vector<8x16xbf16>
    %c0_7 = arith.constant 0 : index
    %c0_8 = arith.constant 0 : index
    %c32 = arith.constant 32 : index
    %11 = vector.load %arg5[%c0_7, %c0_8, %c32] : memref<1x8x96xbf16, #tpu.memory_space<vmem>>, vector<1x8x16xbf16>
    %12 = vector.shape_cast %11 : vector<1x8x16xbf16> to vector<8x16xbf16>
    %c0_9 = arith.constant 0 : index
    %c0_10 = arith.constant 0 : index
    %c64 = arith.constant 64 : index
    %13 = vector.load %arg6[%c0_9, %c0_10, %c64] : memref<1x8x96xbf16, #tpu.memory_space<vmem>>, vector<1x8x16xbf16>
    %14 = vector.shape_cast %13 : vector<1x8x16xbf16> to vector<8x16xbf16>
    %cst_11 = arith.constant dense<0.000000e+00> : vector<8x8xf32>
    %15 = tpu.matmul %10, %12, %cst_11 {dimension_numbers = #tpu.dot_dimension_numbers<[1], [1], [0], [0], [0, 0, 1, 0], [], []>} : vector<8x16xbf16>, vector<8x16xbf16>, vector<8x8xf32> -> vector<8x8xf32>
    %cst_12 = arith.constant 2.500000e-01 : f32
    %16 = vector.broadcast %cst_12 : f32 to vector<8x8xf32>
    %17 = arith.mulf %15, %16 : vector<8x8xf32>
    %18 = vector.broadcast %8 : vector<1x8xf32> to vector<8x8xf32>
    %19 = arith.addf %17, %18 : vector<8x8xf32>
    %c0_13 = arith.constant 0 : index
    %c0_14 = arith.constant 0 : index
    %c0_15 = arith.constant 0 : index
    %20 = vector.load %arg9[%c0_13, %c0_14, %c0_15] : memref<2x8x1xf32, #tpu.memory_space<vmem>>, vector<1x8x1xf32>
    %21 = vector.shape_cast %20 : vector<1x8x1xf32> to vector<8x1xf32>
    %cst_16 = arith.constant dense<0xFF800000> : vector<8xf32>
    %22 = vector.multi_reduction <maximumf>, %19, %cst_16 [1] : vector<8x8xf32> to vector<8xf32>
    %23 = vector.shape_cast %22 : vector<8xf32> to vector<8x1xf32>
    %24 = arith.maximumf %21, %23 : vector<8x1xf32>
    %25 = arith.subf %21, %24 : vector<8x1xf32>
    %26 = math.exp %25 : vector<8x1xf32>
    %27 = vector.broadcast %24 : vector<8x1xf32> to vector<8x8xf32>
    %28 = arith.subf %19, %27 : vector<8x8xf32>
    %29 = math.exp %28 : vector<8x8xf32>
    %c0_17 = arith.constant 0 : index
    %c0_18 = arith.constant 0 : index
    %c0_19 = arith.constant 0 : index
    %30 = vector.load %arg10[%c0_17, %c0_18, %c0_19] : memref<2x8x1xf32, #tpu.memory_space<vmem>>, vector<1x8x1xf32>
    %31 = vector.shape_cast %30 : vector<1x8x1xf32> to vector<8x1xf32>
    %32 = arith.mulf %26, %31 : vector<8x1xf32>
    %cst_20 = arith.constant dense<0.000000e+00> : vector<8xf32>
    %33 = vector.multi_reduction <add>, %29, %cst_20 [1] : vector<8x8xf32> to vector<8xf32>
    %34 = vector.shape_cast %33 : vector<8xf32> to vector<8x1xf32>
    %35 = arith.addf %32, %34 : vector<8x1xf32>
    %c0_21 = arith.constant 0 : index
    %c0_22 = arith.constant 0 : index
    %c0_23 = arith.constant 0 : index
    %36 = vector.load %arg10[%c0_21, %c0_22, %c0_23] : memref<2x8x1xf32, #tpu.memory_space<vmem>>, vector<1x8x1xf32>
    %37 = vector.shape_cast %36 : vector<1x8x1xf32> to vector<8x1xf32>
    %38 = vector.shape_cast %35 : vector<8x1xf32> to vector<1x8x1xf32>
    tpu.vector_store %arg10[%c0_21, %c0_22, %c0_23], %38 {strides = array<i32>} : memref<2x8x1xf32, #tpu.memory_space<vmem>>, vector<1x8x1xf32>,
    %c0_24 = arith.constant 0 : index
    %c0_25 = arith.constant 0 : index
    %39 = vector.load %arg11[%c0_24, %c0_25] : memref<8x32xf32, #tpu.memory_space<vmem>>, vector<8x16xf32>
    %40 = vector.broadcast %26 : vector<8x1xf32> to vector<8x16xf32>
    %41 = arith.mulf %40, %39 : vector<8x16xf32>
    %42 = arith.truncf %29 : vector<8x8xf32> to vector<8x8xbf16>
    %cst_26 = arith.constant dense<0.000000e+00> : vector<8x16xf32>
    %43 = tpu.matmul %42, %14, %cst_26 {dimension_numbers = #tpu.dot_dimension_numbers<[1], [0], [0], [1], [0, 0, 1, 1], [], []>} : vector<8x8xbf16>, vector<8x16xbf16>, vector<8x16xf32> -> vector<8x16xf32>
    %44 = arith.addf %41, %43 : vector<8x16xf32>
    %c0_27 = arith.constant 0 : index
    %c0_28 = arith.constant 0 : index
    %45 = vector.load %arg11[%c0_27, %c0_28] : memref<8x32xf32, #tpu.memory_space<vmem>>, vector<8x16xf32>
    tpu.vector_store %arg11[%c0_27, %c0_28], %44 {strides = array<i32>} : memref<8x32xf32, #tpu.memory_space<vmem>>, vector<8x16xf32>,
    %c0_29 = arith.constant 0 : index
    %c0_30 = arith.constant 0 : index
    %c0_31 = arith.constant 0 : index
    %46 = vector.load %arg9[%c0_29, %c0_30, %c0_31] : memref<2x8x1xf32, #tpu.memory_space<vmem>>, vector<1x8x1xf32>
    %47 = vector.shape_cast %46 : vector<1x8x1xf32> to vector<8x1xf32>
    %48 = vector.shape_cast %24 : vector<8x1xf32> to vector<1x8x1xf32>
    tpu.vector_store %arg9[%c0_29, %c0_30, %c0_31], %48 {strides = array<i32>} : memref<2x8x1xf32, #tpu.memory_space<vmem>>, vector<1x8x1xf32>,
    %c0_32 = arith.constant 0 : index
    %c0_33 = arith.constant 0 : index
    %c16 = arith.constant 16 : index
    %49 = vector.load %arg4[%c0_32, %c0_33, %c16] : memref<1x8x96xbf16, #tpu.memory_space<vmem>>, vector<1x8x16xbf16>
    %50 = vector.shape_cast %49 : vector<1x8x16xbf16> to vector<8x16xbf16>
    %c0_34 = arith.constant 0 : index
    %c0_35 = arith.constant 0 : index
    %c48 = arith.constant 48 : index
    %51 = vector.load %arg5[%c0_34, %c0_35, %c48] : memref<1x8x96xbf16, #tpu.memory_space<vmem>>, vector<1x8x16xbf16>
    %52 = vector.shape_cast %51 : vector<1x8x16xbf16> to vector<8x16xbf16>
    %c0_36 = arith.constant 0 : index
    %c0_37 = arith.constant 0 : index
    %c80 = arith.constant 80 : index
    %53 = vector.load %arg6[%c0_36, %c0_37, %c80] : memref<1x8x96xbf16, #tpu.memory_space<vmem>>, vector<1x8x16xbf16>
    %54 = vector.shape_cast %53 : vector<1x8x16xbf16> to vector<8x16xbf16>
    %cst_38 = arith.constant dense<0.000000e+00> : vector<8x8xf32>
    %55 = tpu.matmul %50, %52, %cst_38 {dimension_numbers = #tpu.dot_dimension_numbers<[1], [1], [0], [0], [0, 0, 1, 0], [], []>} : vector<8x16xbf16>, vector<8x16xbf16>, vector<8x8xf32> -> vector<8x8xf32>
    %cst_39 = arith.constant 2.500000e-01 : f32
    %56 = vector.broadcast %cst_39 : f32 to vector<8x8xf32>
    %57 = arith.mulf %55, %56 : vector<8x8xf32>
    %58 = vector.broadcast %8 : vector<1x8xf32> to vector<8x8xf32>
    %59 = arith.addf %57, %58 : vector<8x8xf32>
    %c1 = arith.constant 1 : index
    %c0_40 = arith.constant 0 : index
    %c0_41 = arith.constant 0 : index
    %60 = vector.load %arg9[%c1, %c0_40, %c0_41] : memref<2x8x1xf32, #tpu.memory_space<vmem>>, vector<1x8x1xf32>
    %61 = vector.shape_cast %60 : vector<1x8x1xf32> to vector<8x1xf32>
    %cst_42 = arith.constant dense<0xFF800000> : vector<8xf32>
    %62 = vector.multi_reduction <maximumf>, %59, %cst_42 [1] : vector<8x8xf32> to vector<8xf32>
    %63 = vector.shape_cast %62 : vector<8xf32> to vector<8x1xf32>
    %64 = arith.maximumf %61, %63 : vector<8x1xf32>
    %65 = arith.subf %61, %64 : vector<8x1xf32>
    %66 = math.exp %65 : vector<8x1xf32>
    %67 = vector.broadcast %64 : vector<8x1xf32> to vector<8x8xf32>
    %68 = arith.subf %59, %67 : vector<8x8xf32>
    %69 = math.exp %68 : vector<8x8xf32>
    %c1_43 = arith.constant 1 : index
    %c0_44 = arith.constant 0 : index
    %c0_45 = arith.constant 0 : index
    %70 = vector.load %arg10[%c1_43, %c0_44, %c0_45] : memref<2x8x1xf32, #tpu.memory_space<vmem>>, vector<1x8x1xf32>
    %71 = vector.shape_cast %70 : vector<1x8x1xf32> to vector<8x1xf32>
    %72 = arith.mulf %66, %71 : vector<8x1xf32>
    %cst_46 = arith.constant dense<0.000000e+00> : vector<8xf32>
    %73 = vector.multi_reduction <add>, %69, %cst_46 [1] : vector<8x8xf32> to vector<8xf32>
    %74 = vector.shape_cast %73 : vector<8xf32> to vector<8x1xf32>
    %75 = arith.addf %72, %74 : vector<8x1xf32>
    %c1_47 = arith.constant 1 : index
    %c0_48 = arith.constant 0 : index
    %c0_49 = arith.constant 0 : index
    %76 = vector.load %arg10[%c1_47, %c0_48, %c0_49] : memref<2x8x1xf32, #tpu.memory_space<vmem>>, vector<1x8x1xf32>
    %77 = vector.shape_cast %76 : vector<1x8x1xf32> to vector<8x1xf32>
    %78 = vector.shape_cast %75 : vector<8x1xf32> to vector<1x8x1xf32>
    tpu.vector_store %arg10[%c1_47, %c0_48, %c0_49], %78 {strides = array<i32>} : memref<2x8x1xf32, #tpu.memory_space<vmem>>, vector<1x8x1xf32>,
    %c0_50 = arith.constant 0 : index
    %c16_51 = arith.constant 16 : index
    %79 = vector.load %arg11[%c0_50, %c16_51] : memref<8x32xf32, #tpu.memory_space<vmem>>, vector<8x16xf32>
    %80 = vector.broadcast %66 : vector<8x1xf32> to vector<8x16xf32>
    %81 = arith.mulf %80, %79 : vector<8x16xf32>
    %82 = arith.truncf %69 : vector<8x8xf32> to vector<8x8xbf16>
    %cst_52 = arith.constant dense<0.000000e+00> : vector<8x16xf32>
    %83 = tpu.matmul %82, %54, %cst_52 {dimension_numbers = #tpu.dot_dimension_numbers<[1], [0], [0], [1], [0, 0, 1, 1], [], []>} : vector<8x8xbf16>, vector<8x16xbf16>, vector<8x16xf32> -> vector<8x16xf32>
    %84 = arith.addf %81, %83 : vector<8x16xf32>
    %c0_53 = arith.constant 0 : index
    %c16_54 = arith.constant 16 : index
    %85 = vector.load %arg11[%c0_53, %c16_54] : memref<8x32xf32, #tpu.memory_space<vmem>>, vector<8x16xf32>
    tpu.vector_store %arg11[%c0_53, %c16_54], %84 {strides = array<i32>} : memref<8x32xf32, #tpu.memory_space<vmem>>, vector<8x16xf32>,
    %c1_55 = arith.constant 1 : index
    %c0_56 = arith.constant 0 : index
    %c0_57 = arith.constant 0 : index
    %86 = vector.load %arg9[%c1_55, %c0_56, %c0_57] : memref<2x8x1xf32, #tpu.memory_space<vmem>>, vector<1x8x1xf32>
    %87 = vector.shape_cast %86 : vector<1x8x1xf32> to vector<8x1xf32>
    %88 = vector.shape_cast %64 : vector<8x1xf32> to vector<1x8x1xf32>
    tpu.vector_store %arg9[%c1_55, %c0_56, %c0_57], %88 {strides = array<i32>} : memref<2x8x1xf32, #tpu.memory_space<vmem>>, vector<1x8x1xf32>,
    %c0_i32_58 = arith.constant 0 : i32
    %89 = arith.cmpi eq, %arg3, %c0_i32_58 : i32
    %90 = arith.extui %89 : i1 to i32
    %c0_i32_59 = arith.constant 0 : i32
    %91 = arith.cmpi ne, %90, %c0_i32_59 : i32
    scf.if %91 {
      %c0_60 = arith.constant 0 : index
      %c0_61 = arith.constant 0 : index
      %92 = vector.load %arg11[%c0_60, %c0_61] : memref<8x32xf32, #tpu.memory_space<vmem>>, vector<8x16xf32>
      %c0_62 = arith.constant 0 : index
      %c0_63 = arith.constant 0 : index
      %c0_64 = arith.constant 0 : index
      %93 = vector.load %arg10[%c0_62, %c0_63, %c0_64] : memref<2x8x1xf32, #tpu.memory_space<vmem>>, vector<1x8x1xf32>
      %94 = vector.shape_cast %93 : vector<1x8x1xf32> to vector<8x1xf32>
      %95 = tpu.reciprocal %94 {approx = true} : vector<8x1xf32> -> vector<8x1xf32>
      %96 = vector.broadcast %95 : vector<8x1xf32> to vector<8x16xf32>
      %97 = arith.mulf %92, %96 : vector<8x16xf32>
      %c0_65 = arith.constant 0 : index
      %c0_66 = arith.constant 0 : index
      %98 = vector.load %arg11[%c0_65, %c0_66] : memref<8x32xf32, #tpu.memory_space<vmem>>, vector<8x16xf32>
      tpu.vector_store %arg11[%c0_65, %c0_66], %97 {strides = array<i32>} : memref<8x32xf32, #tpu.memory_space<vmem>>, vector<8x16xf32>,
      %c0_67 = arith.constant 0 : index
      %c16_68 = arith.constant 16 : index
      %99 = vector.load %arg11[%c0_67, %c16_68] : memref<8x32xf32, #tpu.memory_space<vmem>>, vector<8x16xf32>
      %c1_69 = arith.constant 1 : index
      %c0_70 = arith.constant 0 : index
      %c0_71 = arith.constant 0 : index
      %100 = vector.load %arg10[%c1_69, %c0_70, %c0_71] : memref<2x8x1xf32, #tpu.memory_space<vmem>>, vector<1x8x1xf32>
      %101 = vector.shape_cast %100 : vector<1x8x1xf32> to vector<8x1xf32>
      %102 = tpu.reciprocal %101 {approx = true} : vector<8x1xf32> -> vector<8x1xf32>
      %103 = vector.broadcast %102 : vector<8x1xf32> to vector<8x16xf32>
      %104 = arith.mulf %99, %103 : vector<8x16xf32>
      %c0_72 = arith.constant 0 : index
      %c16_73 = arith.constant 16 : index
      %105 = vector.load %arg11[%c0_72, %c16_73] : memref<8x32xf32, #tpu.memory_space<vmem>>, vector<8x16xf32>
      tpu.vector_store %arg11[%c0_72, %c16_73], %104 {strides = array<i32>} : memref<8x32xf32, #tpu.memory_space<vmem>>, vector<8x16xf32>,
      %c0_74 = arith.constant 0 : index
      %c0_75 = arith.constant 0 : index
      %106 = vector.load %arg11[%c0_74, %c0_75] : memref<8x32xf32, #tpu.memory_space<vmem>>, vector<8x32xf32>
      %107 = arith.truncf %106 : vector<8x32xf32> to vector<8x32xbf16>
      %c0_76 = arith.constant 0 : index
      %c0_77 = arith.constant 0 : index
      %c0_78 = arith.constant 0 : index
      %108 = vector.load %arg8[%c0_76, %c0_77, %c0_78] : memref<1x8x32xbf16, #tpu.memory_space<vmem>>, vector<1x8x32xbf16>
      %109 = vector.shape_cast %108 : vector<1x8x32xbf16> to vector<8x32xbf16>
      %110 = vector.shape_cast %107 : vector<8x32xbf16> to vector<1x8x32xbf16>
      tpu.vector_store %arg8[%c0_76, %c0_77, %c0_78], %110 {strides = array<i32>} : memref<1x8x32xbf16, #tpu.memory_space<vmem>>, vector<1x8x32xbf16>,
    } else {
    }
    return
  }
  func.func @transform_0(%arg0: i32, %arg1: i32, %arg2: i32, %arg3: i32) -> (i32, i32, i32) {
    %c0_i32 = arith.constant 0 : i32
    %c0_i32_0 = arith.constant 0 : i32
    return %arg0, %arg2, %c0_i32 : i32, i32, i32
  }
  func.func @transform_1(%arg0: i32, %arg1: i32, %arg2: i32, %arg3: i32) -> (i32, i32, i32) {
    %c0_i32 = arith.constant 0 : i32
    %c0_i32_0 = arith.constant 0 : i32
    return %arg0, %arg3, %c0_i32 : i32, i32, i32
  }
  func.func @transform_2(%arg0: i32, %arg1: i32, %arg2: i32, %arg3: i32) -> (i32, i32, i32) {
    %c0_i32 = arith.constant 0 : i32
    %c0_i32_0 = arith.constant 0 : i32
    return %arg0, %arg3, %c0_i32 : i32, i32, i32
  }
  func.func @transform_3(%arg0: i32, %arg1: i32, %arg2: i32, %arg3: i32) -> (i32, i32, i32) {
    %c0_i32 = arith.constant 0 : i32
    %c0_i32_0 = arith.constant 0 : i32
    return %arg0, %c0_i32, %arg3 : i32, i32, i32
  }
  func.func @transform_4(%arg0: i32, %arg1: i32, %arg2: i32, %arg3: i32) -> (i32, i32, i32) {
    %c0_i32 = arith.constant 0 : i32
    return %arg0, %arg2, %arg1 : i32, i32, i32
  }
}

module attributes {stable_mosaic.version = 11 : i64} {
  func.func @_linear_res_ln_kernel(%arg0: i32, %arg1: i32, %arg2: memref<16x32xbf16, #tpu.memory_space<vmem>>, %arg3: memref<32x32xbf16, #tpu.memory_space<vmem>>, %arg4: memref<1x32xf32, #tpu.memory_space<vmem>>, %arg5: memref<16x32xbf16, #tpu.memory_space<vmem>>, %arg6: memref<1x32xf32, #tpu.memory_space<vmem>>, %arg7: memref<1x32xf32, #tpu.memory_space<vmem>>, %arg8: memref<16x32xbf16, #tpu.memory_space<vmem>>, %arg9: memref<16x32xf32, #tpu.memory_space<vmem>>) attributes {dimension_semantics = [#tpu.dimension_semantics<parallel>, #tpu.dimension_semantics<arbitrary>], iteration_bounds = array<i64: 1, 1>, scalar_prefetch = 0 : i64, scratch_operands = 1 : i64, tpu.core_type = #tpu.core_type<tc>, window_params = [{transform_indices = @transform_0, window_bounds = array<i64: 16, 32>}, {transform_indices = @transform_1, window_bounds = array<i64: 32, 32>}, {pipeline_mode = #tpu.pipeline_mode<synchronous>, transform_indices = @transform_2, window_bounds = array<i64: 1, 32>}, {transform_indices = @transform_3, window_bounds = array<i64: 16, 32>}, {pipeline_mode = #tpu.pipeline_mode<synchronous>, transform_indices = @transform_4, window_bounds = array<i64: 1, 32>}, {pipeline_mode = #tpu.pipeline_mode<synchronous>, transform_indices = @transform_5, window_bounds = array<i64: 1, 32>}, {transform_indices = @transform_6, window_bounds = array<i64: 16, 32>}]} {
    %c0_i32 = arith.constant 0 : i32
    %0 = arith.cmpi eq, %arg1, %c0_i32 : i32
    %1 = arith.extui %0 : i1 to i32
    %c0_i32_0 = arith.constant 0 : i32
    %2 = arith.cmpi ne, %1, %c0_i32_0 : i32
    scf.if %2 {
      %cst_10 = arith.constant 0.000000e+00 : f32
      %12 = vector.broadcast %cst_10 : f32 to vector<16x32xf32>
      %c0_11 = arith.constant 0 : index
      %c0_12 = arith.constant 0 : index
      %13 = vector.load %arg9[%c0_11, %c0_12] : memref<16x32xf32, #tpu.memory_space<vmem>>, vector<16x32xf32>
      tpu.vector_store %arg9[%c0_11, %c0_12], %12 {strides = array<i32>} : memref<16x32xf32, #tpu.memory_space<vmem>>, vector<16x32xf32>,
    } else {
    }
    %c0 = arith.constant 0 : index
    %c0_1 = arith.constant 0 : index
    %3 = vector.load %arg9[%c0, %c0_1] : memref<16x32xf32, #tpu.memory_space<vmem>>, vector<16x32xf32>
    %c0_2 = arith.constant 0 : index
    %c0_3 = arith.constant 0 : index
    %4 = vector.load %arg2[%c0_2, %c0_3] : memref<16x32xbf16, #tpu.memory_space<vmem>>, vector<16x32xbf16>
    %c0_4 = arith.constant 0 : index
    %c0_5 = arith.constant 0 : index
    %5 = vector.load %arg3[%c0_4, %c0_5] : memref<32x32xbf16, #tpu.memory_space<vmem>>, vector<32x32xbf16>
    %cst = arith.constant dense<0.000000e+00> : vector<16x32xf32>
    %6 = tpu.matmul %4, %5, %cst {dimension_numbers = #tpu.dot_dimension_numbers<[1], [0], [0], [1], [0, 0, 1, 1], [], []>} : vector<16x32xbf16>, vector<32x32xbf16>, vector<16x32xf32> -> vector<16x32xf32>
    %7 = arith.addf %3, %6 : vector<16x32xf32>
    %c0_6 = arith.constant 0 : index
    %c0_7 = arith.constant 0 : index
    %8 = vector.load %arg9[%c0_6, %c0_7] : memref<16x32xf32, #tpu.memory_space<vmem>>, vector<16x32xf32>
    tpu.vector_store %arg9[%c0_6, %c0_7], %7 {strides = array<i32>} : memref<16x32xf32, #tpu.memory_space<vmem>>, vector<16x32xf32>,
    %c0_i32_8 = arith.constant 0 : i32
    %9 = arith.cmpi eq, %arg1, %c0_i32_8 : i32
    %10 = arith.extui %9 : i1 to i32
    %c0_i32_9 = arith.constant 0 : i32
    %11 = arith.cmpi ne, %10, %c0_i32_9 : i32
    scf.if %11 {
      %c0_10 = arith.constant 0 : index
      %c0_11 = arith.constant 0 : index
      %12 = vector.load %arg9[%c0_10, %c0_11] : memref<16x32xf32, #tpu.memory_space<vmem>>, vector<16x32xf32>
      %c0_12 = arith.constant 0 : index
      %c0_13 = arith.constant 0 : index
      %13 = vector.load %arg4[%c0_12, %c0_13] : memref<1x32xf32, #tpu.memory_space<vmem>>, vector<1x32xf32>
      %14 = vector.broadcast %13 : vector<1x32xf32> to vector<16x32xf32>
      %15 = arith.addf %12, %14 : vector<16x32xf32>
      %c0_14 = arith.constant 0 : index
      %c0_15 = arith.constant 0 : index
      %16 = vector.load %arg5[%c0_14, %c0_15] : memref<16x32xbf16, #tpu.memory_space<vmem>>, vector<16x32xbf16>
      %17 = arith.extf %16 : vector<16x32xbf16> to vector<16x32xf32>
      %18 = arith.addf %15, %17 : vector<16x32xf32>
      %cst_16 = arith.constant dense<0.000000e+00> : vector<16xf32>
      %19 = vector.multi_reduction <add>, %18, %cst_16 [1] : vector<16x32xf32> to vector<16xf32>
      %20 = vector.shape_cast %19 : vector<16xf32> to vector<16x1xf32>
      %cst_17 = arith.constant 3.200000e+01 : f32
      %21 = vector.broadcast %cst_17 : f32 to vector<16x1xf32>
      %22 = arith.divf %20, %21 : vector<16x1xf32>
      %23 = vector.broadcast %22 : vector<16x1xf32> to vector<16x32xf32>
      %24 = arith.subf %18, %23 : vector<16x32xf32>
      %25 = arith.mulf %24, %24 : vector<16x32xf32>
      %cst_18 = arith.constant dense<0.000000e+00> : vector<16xf32>
      %26 = vector.multi_reduction <add>, %25, %cst_18 [1] : vector<16x32xf32> to vector<16xf32>
      %27 = vector.shape_cast %26 : vector<16xf32> to vector<16x1xf32>
      %cst_19 = arith.constant 3.200000e+01 : f32
      %28 = vector.broadcast %cst_19 : f32 to vector<16x1xf32>
      %29 = arith.divf %27, %28 : vector<16x1xf32>
      %cst_20 = arith.constant 9.99999996E-13 : f32
      %30 = vector.broadcast %cst_20 : f32 to vector<16x1xf32>
      %31 = arith.addf %29, %30 : vector<16x1xf32>
      %32 = math.rsqrt %31 : vector<16x1xf32>
      %33 = vector.broadcast %32 : vector<16x1xf32> to vector<16x32xf32>
      %34 = arith.mulf %24, %33 : vector<16x32xf32>
      %c0_21 = arith.constant 0 : index
      %c0_22 = arith.constant 0 : index
      %35 = vector.load %arg6[%c0_21, %c0_22] : memref<1x32xf32, #tpu.memory_space<vmem>>, vector<1x32xf32>
      %36 = vector.broadcast %35 : vector<1x32xf32> to vector<16x32xf32>
      %37 = arith.mulf %34, %36 : vector<16x32xf32>
      %c0_23 = arith.constant 0 : index
      %c0_24 = arith.constant 0 : index
      %38 = vector.load %arg7[%c0_23, %c0_24] : memref<1x32xf32, #tpu.memory_space<vmem>>, vector<1x32xf32>
      %39 = vector.broadcast %38 : vector<1x32xf32> to vector<16x32xf32>
      %40 = arith.addf %37, %39 : vector<16x32xf32>
      %41 = arith.truncf %40 : vector<16x32xf32> to vector<16x32xbf16>
      %c0_25 = arith.constant 0 : index
      %c0_26 = arith.constant 0 : index
      %42 = vector.load %arg8[%c0_25, %c0_26] : memref<16x32xbf16, #tpu.memory_space<vmem>>, vector<16x32xbf16>
      tpu.vector_store %arg8[%c0_25, %c0_26], %41 {strides = array<i32>} : memref<16x32xbf16, #tpu.memory_space<vmem>>, vector<16x32xbf16>,
    } else {
    }
    return
  }
  func.func @transform_0(%arg0: i32, %arg1: i32) -> (i32, i32) {
    %c0_i32 = arith.constant 0 : i32
    return %arg0, %arg1 : i32, i32
  }
  func.func @transform_1(%arg0: i32, %arg1: i32) -> (i32, i32) {
    %c0_i32 = arith.constant 0 : i32
    %c0_i32_0 = arith.constant 0 : i32
    return %arg1, %c0_i32 : i32, i32
  }
  func.func @transform_2(%arg0: i32, %arg1: i32) -> (i32, i32) {
    %c0_i32 = arith.constant 0 : i32
    %c0_i32_0 = arith.constant 0 : i32
    %c0_i32_1 = arith.constant 0 : i32
    return %c0_i32, %c0_i32_0 : i32, i32
  }
  func.func @transform_3(%arg0: i32, %arg1: i32) -> (i32, i32) {
    %c0_i32 = arith.constant 0 : i32
    %c0_i32_0 = arith.constant 0 : i32
    return %arg0, %c0_i32 : i32, i32
  }
  func.func @transform_4(%arg0: i32, %arg1: i32) -> (i32, i32) {
    %c0_i32 = arith.constant 0 : i32
    %c0_i32_0 = arith.constant 0 : i32
    %c0_i32_1 = arith.constant 0 : i32
    return %c0_i32, %c0_i32_0 : i32, i32
  }
  func.func @transform_5(%arg0: i32, %arg1: i32) -> (i32, i32) {
    %c0_i32 = arith.constant 0 : i32
    %c0_i32_0 = arith.constant 0 : i32
    %c0_i32_1 = arith.constant 0 : i32
    return %c0_i32, %c0_i32_0 : i32, i32
  }
  func.func @transform_6(%arg0: i32, %arg1: i32) -> (i32, i32) {
    %c0_i32 = arith.constant 0 : i32
    %c0_i32_0 = arith.constant 0 : i32
    return %arg0, %c0_i32 : i32, i32
  }
}

module attributes {stable_mosaic.version = 11 : i64} {
  func.func @_ffn_res_ln_kernel(%arg0: i32, %arg1: i32, %arg2: memref<16x32xbf16, #tpu.memory_space<vmem>>, %arg3: memref<32x64xbf16, #tpu.memory_space<vmem>>, %arg4: memref<1x64xf32, #tpu.memory_space<vmem>>, %arg5: memref<64x32xbf16, #tpu.memory_space<vmem>>, %arg6: memref<1x32xf32, #tpu.memory_space<vmem>>, %arg7: memref<16x32xbf16, #tpu.memory_space<vmem>>, %arg8: memref<1x32xf32, #tpu.memory_space<vmem>>, %arg9: memref<1x32xf32, #tpu.memory_space<vmem>>, %arg10: memref<16x32xbf16, #tpu.memory_space<vmem>>, %arg11: memref<16x32xf32, #tpu.memory_space<vmem>>) attributes {dimension_semantics = [#tpu.dimension_semantics<parallel>, #tpu.dimension_semantics<arbitrary>], iteration_bounds = array<i64: 1, 1>, scalar_prefetch = 0 : i64, scratch_operands = 1 : i64, tpu.core_type = #tpu.core_type<tc>, window_params = [{transform_indices = @transform_0, window_bounds = array<i64: 16, 32>}, {transform_indices = @transform_1, window_bounds = array<i64: 32, 64>}, {transform_indices = @transform_2, window_bounds = array<i64: 1, 64>}, {transform_indices = @transform_3, window_bounds = array<i64: 64, 32>}, {pipeline_mode = #tpu.pipeline_mode<synchronous>, transform_indices = @transform_4, window_bounds = array<i64: 1, 32>}, {transform_indices = @transform_5, window_bounds = array<i64: 16, 32>}, {pipeline_mode = #tpu.pipeline_mode<synchronous>, transform_indices = @transform_6, window_bounds = array<i64: 1, 32>}, {pipeline_mode = #tpu.pipeline_mode<synchronous>, transform_indices = @transform_7, window_bounds = array<i64: 1, 32>}, {transform_indices = @transform_8, window_bounds = array<i64: 16, 32>}]} {
    %c0_i32 = arith.constant 0 : i32
    %0 = arith.cmpi eq, %arg1, %c0_i32 : i32
    %1 = arith.extui %0 : i1 to i32
    %c0_i32_0 = arith.constant 0 : i32
    %2 = arith.cmpi ne, %1, %c0_i32_0 : i32
    scf.if %2 {
      %cst_19 = arith.constant 0.000000e+00 : f32
      %31 = vector.broadcast %cst_19 : f32 to vector<16x32xf32>
      %c0_20 = arith.constant 0 : index
      %c0_21 = arith.constant 0 : index
      %32 = vector.load %arg11[%c0_20, %c0_21] : memref<16x32xf32, #tpu.memory_space<vmem>>, vector<16x32xf32>
      tpu.vector_store %arg11[%c0_20, %c0_21], %31 {strides = array<i32>} : memref<16x32xf32, #tpu.memory_space<vmem>>, vector<16x32xf32>,
    } else {
    }
    %c0 = arith.constant 0 : index
    %c0_1 = arith.constant 0 : index
    %3 = vector.load %arg2[%c0, %c0_1] : memref<16x32xbf16, #tpu.memory_space<vmem>>, vector<16x32xbf16>
    %c0_2 = arith.constant 0 : index
    %c0_3 = arith.constant 0 : index
    %4 = vector.load %arg3[%c0_2, %c0_3] : memref<32x64xbf16, #tpu.memory_space<vmem>>, vector<32x64xbf16>
    %cst = arith.constant dense<0.000000e+00> : vector<16x64xf32>
    %5 = tpu.matmul %3, %4, %cst {dimension_numbers = #tpu.dot_dimension_numbers<[1], [0], [0], [1], [0, 0, 1, 1], [], []>} : vector<16x32xbf16>, vector<32x64xbf16>, vector<16x64xf32> -> vector<16x64xf32>
    %c0_4 = arith.constant 0 : index
    %c0_5 = arith.constant 0 : index
    %6 = vector.load %arg4[%c0_4, %c0_5] : memref<1x64xf32, #tpu.memory_space<vmem>>, vector<1x64xf32>
    %7 = vector.broadcast %6 : vector<1x64xf32> to vector<16x64xf32>
    %8 = arith.addf %5, %7 : vector<16x64xf32>
    %cst_6 = arith.constant 5.000000e-01 : f32
    %9 = vector.broadcast %cst_6 : f32 to vector<16x64xf32>
    %10 = arith.mulf %9, %8 : vector<16x64xf32>
    %cst_7 = arith.constant 4.471500e-02 : f32
    %11 = vector.broadcast %cst_7 : f32 to vector<16x64xf32>
    %12 = arith.mulf %11, %8 : vector<16x64xf32>
    %13 = arith.mulf %12, %8 : vector<16x64xf32>
    %14 = arith.mulf %13, %8 : vector<16x64xf32>
    %15 = arith.addf %8, %14 : vector<16x64xf32>
    %cst_8 = arith.constant 0.797884583 : f32
    %16 = vector.broadcast %cst_8 : f32 to vector<16x64xf32>
    %17 = arith.mulf %16, %15 : vector<16x64xf32>
    %18 = math.tanh %17 : vector<16x64xf32>
    %cst_9 = arith.constant 1.000000e+00 : f32
    %19 = vector.broadcast %cst_9 : f32 to vector<16x64xf32>
    %20 = arith.addf %19, %18 : vector<16x64xf32>
    %21 = arith.mulf %10, %20 : vector<16x64xf32>
    %c0_10 = arith.constant 0 : index
    %c0_11 = arith.constant 0 : index
    %22 = vector.load %arg11[%c0_10, %c0_11] : memref<16x32xf32, #tpu.memory_space<vmem>>, vector<16x32xf32>
    %23 = arith.truncf %21 : vector<16x64xf32> to vector<16x64xbf16>
    %c0_12 = arith.constant 0 : index
    %c0_13 = arith.constant 0 : index
    %24 = vector.load %arg5[%c0_12, %c0_13] : memref<64x32xbf16, #tpu.memory_space<vmem>>, vector<64x32xbf16>
    %cst_14 = arith.constant dense<0.000000e+00> : vector<16x32xf32>
    %25 = tpu.matmul %23, %24, %cst_14 {dimension_numbers = #tpu.dot_dimension_numbers<[1], [0], [0], [1], [0, 0, 1, 1], [], []>} : vector<16x64xbf16>, vector<64x32xbf16>, vector<16x32xf32> -> vector<16x32xf32>
    %26 = arith.addf %22, %25 : vector<16x32xf32>
    %c0_15 = arith.constant 0 : index
    %c0_16 = arith.constant 0 : index
    %27 = vector.load %arg11[%c0_15, %c0_16] : memref<16x32xf32, #tpu.memory_space<vmem>>, vector<16x32xf32>
    tpu.vector_store %arg11[%c0_15, %c0_16], %26 {strides = array<i32>} : memref<16x32xf32, #tpu.memory_space<vmem>>, vector<16x32xf32>,
    %c0_i32_17 = arith.constant 0 : i32
    %28 = arith.cmpi eq, %arg1, %c0_i32_17 : i32
    %29 = arith.extui %28 : i1 to i32
    %c0_i32_18 = arith.constant 0 : i32
    %30 = arith.cmpi ne, %29, %c0_i32_18 : i32
    scf.if %30 {
      %c0_19 = arith.constant 0 : index
      %c0_20 = arith.constant 0 : index
      %31 = vector.load %arg11[%c0_19, %c0_20] : memref<16x32xf32, #tpu.memory_space<vmem>>, vector<16x32xf32>
      %c0_21 = arith.constant 0 : index
      %c0_22 = arith.constant 0 : index
      %32 = vector.load %arg6[%c0_21, %c0_22] : memref<1x32xf32, #tpu.memory_space<vmem>>, vector<1x32xf32>
      %33 = vector.broadcast %32 : vector<1x32xf32> to vector<16x32xf32>
      %34 = arith.addf %31, %33 : vector<16x32xf32>
      %c0_23 = arith.constant 0 : index
      %c0_24 = arith.constant 0 : index
      %35 = vector.load %arg7[%c0_23, %c0_24] : memref<16x32xbf16, #tpu.memory_space<vmem>>, vector<16x32xbf16>
      %36 = arith.extf %35 : vector<16x32xbf16> to vector<16x32xf32>
      %37 = arith.addf %34, %36 : vector<16x32xf32>
      %cst_25 = arith.constant dense<0.000000e+00> : vector<16xf32>
      %38 = vector.multi_reduction <add>, %37, %cst_25 [1] : vector<16x32xf32> to vector<16xf32>
      %39 = vector.shape_cast %38 : vector<16xf32> to vector<16x1xf32>
      %cst_26 = arith.constant 3.200000e+01 : f32
      %40 = vector.broadcast %cst_26 : f32 to vector<16x1xf32>
      %41 = arith.divf %39, %40 : vector<16x1xf32>
      %42 = vector.broadcast %41 : vector<16x1xf32> to vector<16x32xf32>
      %43 = arith.subf %37, %42 : vector<16x32xf32>
      %44 = arith.mulf %43, %43 : vector<16x32xf32>
      %cst_27 = arith.constant dense<0.000000e+00> : vector<16xf32>
      %45 = vector.multi_reduction <add>, %44, %cst_27 [1] : vector<16x32xf32> to vector<16xf32>
      %46 = vector.shape_cast %45 : vector<16xf32> to vector<16x1xf32>
      %cst_28 = arith.constant 3.200000e+01 : f32
      %47 = vector.broadcast %cst_28 : f32 to vector<16x1xf32>
      %48 = arith.divf %46, %47 : vector<16x1xf32>
      %cst_29 = arith.constant 9.99999996E-13 : f32
      %49 = vector.broadcast %cst_29 : f32 to vector<16x1xf32>
      %50 = arith.addf %48, %49 : vector<16x1xf32>
      %51 = math.rsqrt %50 : vector<16x1xf32>
      %52 = vector.broadcast %51 : vector<16x1xf32> to vector<16x32xf32>
      %53 = arith.mulf %43, %52 : vector<16x32xf32>
      %c0_30 = arith.constant 0 : index
      %c0_31 = arith.constant 0 : index
      %54 = vector.load %arg8[%c0_30, %c0_31] : memref<1x32xf32, #tpu.memory_space<vmem>>, vector<1x32xf32>
      %55 = vector.broadcast %54 : vector<1x32xf32> to vector<16x32xf32>
      %56 = arith.mulf %53, %55 : vector<16x32xf32>
      %c0_32 = arith.constant 0 : index
      %c0_33 = arith.constant 0 : index
      %57 = vector.load %arg9[%c0_32, %c0_33] : memref<1x32xf32, #tpu.memory_space<vmem>>, vector<1x32xf32>
      %58 = vector.broadcast %57 : vector<1x32xf32> to vector<16x32xf32>
      %59 = arith.addf %56, %58 : vector<16x32xf32>
      %60 = arith.truncf %59 : vector<16x32xf32> to vector<16x32xbf16>
      %c0_34 = arith.constant 0 : index
      %c0_35 = arith.constant 0 : index
      %61 = vector.load %arg10[%c0_34, %c0_35] : memref<16x32xbf16, #tpu.memory_space<vmem>>, vector<16x32xbf16>
      tpu.vector_store %arg10[%c0_34, %c0_35], %60 {strides = array<i32>} : memref<16x32xbf16, #tpu.memory_space<vmem>>, vector<16x32xbf16>,
    } else {
    }
    return
  }
  func.func @transform_0(%arg0: i32, %arg1: i32) -> (i32, i32) {
    %c0_i32 = arith.constant 0 : i32
    %c0_i32_0 = arith.constant 0 : i32
    return %arg0, %c0_i32 : i32, i32
  }
  func.func @transform_1(%arg0: i32, %arg1: i32) -> (i32, i32) {
    %c0_i32 = arith.constant 0 : i32
    %c0_i32_0 = arith.constant 0 : i32
    return %c0_i32, %arg1 : i32, i32
  }
  func.func @transform_2(%arg0: i32, %arg1: i32) -> (i32, i32) {
    %c0_i32 = arith.constant 0 : i32
    %c0_i32_0 = arith.constant 0 : i32
    return %c0_i32, %arg1 : i32, i32
  }
  func.func @transform_3(%arg0: i32, %arg1: i32) -> (i32, i32) {
    %c0_i32 = arith.constant 0 : i32
    %c0_i32_0 = arith.constant 0 : i32
    return %arg1, %c0_i32 : i32, i32
  }
  func.func @transform_4(%arg0: i32, %arg1: i32) -> (i32, i32) {
    %c0_i32 = arith.constant 0 : i32
    %c0_i32_0 = arith.constant 0 : i32
    %c0_i32_1 = arith.constant 0 : i32
    return %c0_i32, %c0_i32_0 : i32, i32
  }
  func.func @transform_5(%arg0: i32, %arg1: i32) -> (i32, i32) {
    %c0_i32 = arith.constant 0 : i32
    %c0_i32_0 = arith.constant 0 : i32
    return %arg0, %c0_i32 : i32, i32
  }
  func.func @transform_6(%arg0: i32, %arg1: i32) -> (i32, i32) {
    %c0_i32 = arith.constant 0 : i32
    %c0_i32_0 = arith.constant 0 : i32
    %c0_i32_1 = arith.constant 0 : i32
    return %c0_i32, %c0_i32_0 : i32, i32
  }
  func.func @transform_7(%arg0: i32, %arg1: i32) -> (i32, i32) {
    %c0_i32 = arith.constant 0 : i32
    %c0_i32_0 = arith.constant 0 : i32
    %c0_i32_1 = arith.constant 0 : i32
    return %c0_i32, %c0_i32_0 : i32, i32
  }
  func.func @transform_8(%arg0: i32, %arg1: i32) -> (i32, i32) {
    %c0_i32 = arith.constant 0 : i32
    %c0_i32_0 = arith.constant 0 : i32
    return %arg0, %c0_i32 : i32, i32
  }
}

</mosaic_0001>

<llo_original>
// kernel: transformer_forward.9
$region0: #{transformer_forward.9}
  #allocation0 [shape = 'u32[]', space=smem, size = 0x4, offset = 0x4, fixed_abs, tag = 'smem constant byte address 0x4 - core index']
  #allocation1 [shape = 'u32[144,128]{1,0:T(1,128)}', space=vmem, size = 0x12000, scoped, tag = 'internal scratch']
  %s0 = inlined_call_operand.hbm [shape: f32[16,32], index: 0, kind: input, shape index: {}]
  %s1 = inlined_call_operand.hbm [shape: f32[1,32], index: 1, kind: input, shape index: {}]
  %s2 = inlined_call_operand.hbm [shape: f32[1,32], index: 2, kind: input, shape index: {}]
  %s3 = inlined_call_operand.hbm [shape: bf16[16,32], index: 3, kind: output, shape index: {}]
  %s4 = sld [smem:[#allocation0]]
  $region34: #{transformer_forward.9} parent=0
    _
  %s6 = ssub.s32 1, %s4
  %s7 = scalar_select 0, %s6, %s4
  $region1: #{transformer_forward.9} parent=0
    #allocation2 [shape = 'u8[8192]{0}', space=vmem, size = 0x2000, scoped, tag = 'input window, operand 0, single buffered']
    #allocation3 [shape = 's32[1]{0}', space=sflag, size = 0x4, scoped, tag = 'scoped memory for transformer_forward.9']
    #allocation4 [shape = 's32[1]{0}', space=sflag, size = 0x4, scoped, tag = 'scoped memory for transformer_forward.9']
    #allocation5 [shape = 'u8[512]{0}', space=vmem, size = 0x400, scoped, tag = 'input window, operand 1, single buffered']
    #allocation6 [shape = 's32[1]{0}', space=sflag, size = 0x4, scoped, tag = 'scoped memory for transformer_forward.9']
    #allocation7 [shape = 'u8[512]{0}', space=vmem, size = 0x400, scoped, tag = 'input window, operand 2, single buffered']
    #allocation8 [shape = 'u8[4096]{0}', space=vmem, size = 0x1000, scoped, tag = 'output window, operand 0, single buffered']
    %8 = vsyncpa [#allocation3], 0
    %9 = vsyncpa [#allocation6], 0
    %10 = vsyncpa [#allocation4], 0
    // Predicated region
    $region2: #{transformer_forward.9} parent=1 // pred_check
      _
    $region3: #{transformer_forward.9} parent=1 // pred_check_branch
      %12 = sbr.rel (0) target = $region5
    $region4: #{transformer_forward.9} parent=1 // pred_region
      %s14 = ssub.s32 256, 256
      %15 = vsyncadd [#allocation3], %s14
      %s16 = sshll.u32 [#allocation2], 4
      %s17 = int_to_ptr.vmem [resolvable:$true] %s16
      %22 = dma.hbm_to_vmem [thread:$0]  %s0, 256, %s17, [#allocation3], 128, 128, 8
    $region5: #{transformer_forward.9} parent=1 // pred_fallthru
      _
    // Predicated region
    $region6: #{transformer_forward.9} parent=1 // pred_check
      _
    $region7: #{transformer_forward.9} parent=1 // pred_check_branch
      %24 = sbr.rel (0) target = $region9
    $region8: #{transformer_forward.9} parent=1 // pred_region
      %s26 = ssub.s32 16, 16
      %27 = vsyncadd [#allocation6], %s26
      %s29 = sshll.u32 [#allocation5], 4
      %s30 = int_to_ptr.vmem [resolvable:$true] %s29
      %32 = dma.hbm_to_vmem [thread:$0]  %s1, 16, %s30, [#allocation6]
    $region9: #{transformer_forward.9} parent=1 // pred_fallthru
      _
    // Predicated region
    $region10: #{transformer_forward.9} parent=1 // pred_check
      _
    $region11: #{transformer_forward.9} parent=1 // pred_check_branch
      %34 = sbr.rel (0) target = $region13
    $region12: #{transformer_forward.9} parent=1 // pred_region
      %s36 = ssub.s32 16, 16
      %37 = vsyncadd [#allocation6], %s36
      %s39 = sshll.u32 [#allocation7], 4
      %s40 = int_to_ptr.vmem [resolvable:$true] %s39
      %42 = dma.hbm_to_vmem [thread:$0]  %s2, 16, %s40, [#allocation6]
    $region13: #{transformer_forward.9} parent=1 // pred_fallthru
      _
    // Predicated region
    $region14: #{transformer_forward.9} parent=1 // pred_check
      _
    $region15: #{transformer_forward.9} parent=1 // pred_check_branch
      %44 = sbr.rel (0) target = $region17
    $region16: #{transformer_forward.9} parent=1 // pred_region
      %45 = dma.done [#allocation3], 256
    $region17: #{transformer_forward.9} parent=1 // pred_fallthru
      _
    // Predicated region
    $region18: #{transformer_forward.9} parent=1 // pred_check
      _
    $region19: #{transformer_forward.9} parent=1 // pred_check_branch
      %47 = sbr.rel (0) target = $region21
    $region20: #{transformer_forward.9} parent=1 // pred_region
      %48 = dma.done [#allocation6], 16
    $region21: #{transformer_forward.9} parent=1 // pred_fallthru
      _
    // Predicated region
    $region22: #{transformer_forward.9} parent=1 // pred_check
      _
    $region23: #{transformer_forward.9} parent=1 // pred_check_branch
      %50 = sbr.rel (0) target = $region25
    $region24: #{transformer_forward.9} parent=1 // pred_region
      %51 = dma.done [#allocation6], 16
    $region25: #{transformer_forward.9} parent=1 // pred_fallthru
      _
    %v52 = vld [vmem:[#allocation2] sm:$0xff]
    %v53 = vld [vmem:[#allocation2 + $0x8] sm:$0xff]
    %vm54 = vcmask 261120
    %v55 = vsel %vm54, %v52, 0.0
    %56 = vadd.xlane.f32.xlu0 %v55
    %v57 = vpop.xlane.xlu0 %56
    %v58 = vsel %vm54, %v53, 0.0
    %59 = vadd.xlane.f32.xlu0 %v58
    %v60 = vpop.xlane.xlu0 %59
    %v61 = vrcp.pop 32.0
    %v62 = vmul.f32 %v57, %v61
    %v63 = vmul.f32 %v60, %v61
    %v64 = vsub.f32 %v52, %v62
    %v65 = vsub.f32 %v53, %v63
    %v66 = vmul.f32 %v64, %v64
    %v67 = vmul.f32 %v65, %v65
    %v68 = vsel %vm54, %v66, 0.0
    %69 = vadd.xlane.f32.xlu0 %v68
    %v70 = vpop.xlane.xlu0 %69
    %v71 = vsel %vm54, %v67, 0.0
    %72 = vadd.xlane.f32.xlu0 %v71
    %v73 = vpop.xlane.xlu0 %72
    %v74 = vmul.f32 %v70, %v61
    %v75 = vmul.f32 %v73, %v61
    %v76 = vadd.f32 %v74, 1e-12
    %v77 = vadd.f32 %v75, 1e-12
    %v78 = vrsqrt.pop %v76
    %v79 = vrsqrt.pop %v77
    %v80 = vmul.f32 %v64, %v78
    %v81 = vmul.f32 %v65, %v79
    %v82 = vld [vmem:[#allocation5] sm:$0x1]
    %v84 = vlaneseq
    %v85 = vshrl.u32 %v84, 7
    %v86 = vsub.s32 0, %v85
    %v87 = vrot.slane %v82, %v86
    %v89 = vmul.f32 %v80, %v87
    %v90 = vmul.f32 %v81, %v87
    %v91 = vld [vmem:[#allocation7] sm:$0x1]
    %v93 = vlaneseq
    %v94 = vshrl.u32 %v93, 7
    %v95 = vsub.s32 0, %v94
    %v96 = vrot.slane %v91, %v95
    %v98 = vadd.f32 %v89, %v96
    %v99 = vadd.f32 %v90, %v96
    %v100 = vpack.c.bf16 %v99, %v98
    %v102 = vunpack.c.l.b16 %v100
    %v103 = vunpack.c.h.b16 %v100
    %v104 = vpack.c.b16 %v102, %v102
    %v105 = vpack.c.b16 %v103, %v103
    %vm108 = vcmask 257024
    %109 = vst.msk [vmem:[#allocation8] sm:$0xf] %vm108, %v104
    %110 = vst.msk [vmem:[#allocation8 + $0x4] sm:$0xf] %vm108, %v105
    // Predicated region
    $region26: #{transformer_forward.9} parent=1 // pred_check
      _
    $region27: #{transformer_forward.9} parent=1 // pred_check_branch
      %112 = sbr.rel (0) target = $region29
    $region28: #{transformer_forward.9} parent=1 // pred_region
      %s114 = ssub.s32 128, 128
      %115 = vsyncadd [#allocation4], %s114
      %s116 = sshll.u32 [#allocation8], 4
      %s117 = int_to_ptr.vmem [resolvable:$true] %s116
      %122 = dma.vmem_to_hbm [thread:$0]  %s117, 128, %s3, [#allocation4], 64, 64, 4
    $region29: #{transformer_forward.9} parent=1 // pred_fallthru
      _
    // Predicated region
    $region30: #{transformer_forward.9} parent=1 // pred_check
      _
    $region31: #{transformer_forward.9} parent=1 // pred_check_branch
      %124 = sbr.rel (0) target = $region33
    $region32: #{transformer_forward.9} parent=1 // pred_region
      %125 = dma.done [#allocation4], 128
    $region33: #{transformer_forward.9} parent=1 // pred_fallthru
      _
    %126 = vsyncpa [#allocation3], 1
    %127 = vsyncpa [#allocation6], 1
    %128 = vsyncpa [#allocation4], 1

// kernel: transformer_forward.10
$region0: #{transformer_forward.10}
  #allocation0 [shape = 'u32[]', space=smem, size = 0x4, offset = 0x4, fixed_abs, tag = 'smem constant byte address 0x4 - core index']
  #allocation1 [shape = 'u32[144,128]{1,0:T(1,128)}', space=vmem, size = 0x12000, scoped, tag = 'internal scratch']
  #allocation2 [shape = 'f32[16,96]{1,0:T(8,128)}', space=vmem, size = 0x2000, scoped, tag = 'scratch operand']
  %s0 = inlined_call_operand.hbm [shape: bf16[16,32], index: 0, kind: input, shape index: {}]
  %s1 = inlined_call_operand.hbm [shape: bf16[32,96], index: 1, kind: input, shape index: {}]
  %s2 = inlined_call_operand.hbm [shape: f32[1,96], index: 2, kind: input, shape index: {}]
  %s3 = inlined_call_operand.hbm [shape: bf16[16,96], index: 3, kind: output, shape index: {}]
  %s4 = sld [smem:[#allocation0]]
  $region42: #{transformer_forward.10} parent=0
    _
  %s6 = ssub.s32 1, %s4
  %s7 = scalar_select 0, %s6, %s4
  $region1: #{transformer_forward.10} parent=0
    #allocation3 [shape = 'u8[4096]{0}', space=vmem, size = 0x1000, scoped, tag = 'input window, operand 0, single buffered']
    #allocation4 [shape = 's32[1]{0}', space=sflag, size = 0x4, scoped, tag = 'scoped memory for transformer_forward.10']
    #allocation5 [shape = 's32[1]{0}', space=sflag, size = 0x4, scoped, tag = 'scoped memory for transformer_forward.10']
    #allocation6 [shape = 'u8[8192]{0}', space=vmem, size = 0x2000, scoped, tag = 'input window, operand 1, single buffered']
    #allocation7 [shape = 's32[1]{0}', space=sflag, size = 0x4, scoped, tag = 'scoped memory for transformer_forward.10']
    #allocation8 [shape = 'u8[512]{0}', space=vmem, size = 0x400, scoped, tag = 'input window, operand 2, single buffered']
    #allocation9 [shape = 'u8[4096]{0}', space=vmem, size = 0x1000, scoped, tag = 'output window, operand 0, single buffered']
    %8 = vsyncpa [#allocation4], 0
    %9 = vsyncpa [#allocation7], 0
    %10 = vsyncpa [#allocation5], 0
    // Predicated region
    $region2: #{transformer_forward.10} parent=1 // pred_check
      _
    $region3: #{transformer_forward.10} parent=1 // pred_check_branch
      %12 = sbr.rel (0) target = $region5
    $region4: #{transformer_forward.10} parent=1 // pred_region
      %s14 = ssub.s32 128, 128
      %15 = vsyncadd [#allocation4], %s14
      %s16 = sshll.u32 [#allocation3], 4
      %s17 = int_to_ptr.vmem [resolvable:$true] %s16
      %22 = dma.hbm_to_vmem [thread:$0]  %s0, 128, %s17, [#allocation4], 64, 64, 4
    $region5: #{transformer_forward.10} parent=1 // pred_fallthru
      _
    // Predicated region
    $region6: #{transformer_forward.10} parent=1 // pred_check
      _
    $region7: #{transformer_forward.10} parent=1 // pred_check_branch
      %24 = sbr.rel (0) target = $region9
    $region8: #{transformer_forward.10} parent=1 // pred_region
      %s26 = ssub.s32 256, 256
      %27 = vsyncadd [#allocation7], %s26
      %s28 = sshll.u32 [#allocation6], 4
      %s29 = int_to_ptr.vmem [resolvable:$true] %s28
      %34 = dma.hbm_to_vmem [thread:$0]  %s1, 256, %s29, [#allocation7], 64, 64, 4
    $region9: #{transformer_forward.10} parent=1 // pred_fallthru
      _
    // Predicated region
    $region10: #{transformer_forward.10} parent=1 // pred_check
      _
    $region11: #{transformer_forward.10} parent=1 // pred_check_branch
      %36 = sbr.rel (0) target = $region13
    $region12: #{transformer_forward.10} parent=1 // pred_region
      %s38 = ssub.s32 16, 16
      %39 = vsyncadd [#allocation7], %s38
      %s41 = sshll.u32 [#allocation8], 4
      %s42 = int_to_ptr.vmem [resolvable:$true] %s41
      %44 = dma.hbm_to_vmem [thread:$0]  %s2, 16, %s42, [#allocation7]
    $region13: #{transformer_forward.10} parent=1 // pred_fallthru
      _
    // Predicated region
    $region14: #{transformer_forward.10} parent=1 // pred_check
      _
    $region15: #{transformer_forward.10} parent=1 // pred_check_branch
      %46 = sbr.rel (0) target = $region17
    $region16: #{transformer_forward.10} parent=1 // pred_region
      %47 = dma.done [#allocation4], 128
    $region17: #{transformer_forward.10} parent=1 // pred_fallthru
      _
    // Predicated region
    $region18: #{transformer_forward.10} parent=1 // pred_check
      _
    $region19: #{transformer_forward.10} parent=1 // pred_check_branch
      %49 = sbr.rel (0) target = $region21
    $region20: #{transformer_forward.10} parent=1 // pred_region
      %50 = dma.done [#allocation7], 256
    $region21: #{transformer_forward.10} parent=1 // pred_fallthru
      _
    // Predicated region
    $region22: #{transformer_forward.10} parent=1 // pred_check
      _
    $region23: #{transformer_forward.10} parent=1 // pred_check_branch
      %52 = sbr.rel (0) target = $region25
    $region24: #{transformer_forward.10} parent=1 // pred_region
      %53 = dma.done [#allocation7], 16
    $region25: #{transformer_forward.10} parent=1 // pred_fallthru
      _
    %p55 = scmp.eq.s32.totalorder 0, 0
    // Predicated region
    $region26: #{transformer_forward.10} parent=1 // pred_check
      %p56 = pneg %p55
    $region27: #{transformer_forward.10} parent=1 // pred_check_branch
      %58 = sbr.rel (%p56) target = $region29
    $region28: #{transformer_forward.10} parent=1 // pred_region
      %vm59 = vcmask 785408
      %60 = vst.msk [vmem:[#allocation2] sm:$0xff] %vm59, 0.0
      %61 = vst.msk [vmem:[#allocation2 + $0x8] sm:$0xff] %vm59, 0.0
    $region29: #{transformer_forward.10} parent=1 // pred_fallthru
      _
    %v62 = vld [vmem:[#allocation2] sm:$0xff]
    %v63 = vld [vmem:[#allocation2 + $0x8] sm:$0xff]
    %v64 = vld [vmem:[#allocation3] sm:$0xf]
    %v65 = vld [vmem:[#allocation3 + $0x4] sm:$0xf]
    %v66 = vld [vmem:[#allocation6] sm:$0xf]
    %v67 = vld [vmem:[#allocation6 + $0x4] sm:$0xf]
    %v68 = vld [vmem:[#allocation6 + $0x8] sm:$0xf]
    %v69 = vld [vmem:[#allocation6 + $0xc] sm:$0xf]
    %v72 = vunpack.c.l.b16 %v64
    %v73 = vunpack.c.l.b16 %v65
    %v74 = vpack.c.b16 %v73, %v72
    %v79 = vunpack.c.l.b16 %v66
    %v80 = vunpack.c.l.b16 %v67
    %v81 = vunpack.c.l.b16 %v68
    %v82 = vunpack.c.l.b16 %v69
    %v83 = vpack.c.b16 %v80, %v79
    %v84 = vpack.c.b16 %v82, %v81
    %vm87 = vcmask 261120
    %v89 = vsel %vm87, %v74, 0
    %91 = vmatprep.subr.bf16.mxu0 0
    %92 = vmatpush1.bf16.msra.mxu0 %v83
    %93 = vmatprep.subr.bf16.mxu0 0
    %94 = vmatpush1.bf16.msra.mxu0 %v84
    %95 = vmatprep.subr.bf16.mxu0 0
    %96 = vmatpush1.bf16.msra.mxu0 0
    %97 = vmatprep.subr.bf16.mxu0 0
    %98 = vmatpush1.bf16.msra.mxu0 0
    %99 = vmatprep.subr.bf16.mxu0 0
    %100 = vmatpush1.bf16.msra.mxu0 0
    %101 = vmatprep.subr.bf16.mxu0 0
    %102 = vmatpush1.bf16.msra.mxu0 0
    %103 = vmatprep.subr.bf16.mxu0 0
    %104 = vmatpush1.bf16.msra.mxu0 0
    %105 = vmatprep.subr.bf16.mxu0 0
    %106 = vmatpush1.bf16.msra.mxu0 0
    %107 = vmatprep.subr.bf16.mxu0 0
    %108 = vmatpush1.bf16.msra.mxu0 0
    %109 = vmatprep.subr.bf16.mxu0 0
    %110 = vmatpush1.bf16.msra.mxu0 0
    %111 = vmatprep.subr.bf16.mxu0 0
    %112 = vmatpush1.bf16.msra.mxu0 0
    %113 = vmatprep.subr.bf16.mxu0 0
    %114 = vmatpush1.bf16.msra.mxu0 0
    %115 = vmatprep.subr.bf16.mxu0 0
    %116 = vmatpush1.bf16.msra.mxu0 0
    %117 = vmatprep.subr.bf16.mxu0 0
    %118 = vmatpush1.bf16.msra.mxu0 0
    %119 = vmatprep.subr.bf16.mxu0 0
    %120 = vmatpush1.bf16.msra.mxu0 0
    %121 = vmatprep.subr.bf16.mxu0 0
    %122 = vmatpush1.bf16.msra.mxu0 0
    %123 = vmatprep.mubr.bf16.mxu0 0
    %124 = vmatmul.mubr.bf16.gmra.mrb[0].mxu0 %v89
    %v125 = vpop.f32.mrb[0].mxu0
    %v126 = vadd.f32 0.0, %v125
    %v127 = vpop.f32.mrb[0].mxu0
    %v128 = vpop.f32.mrb[0].mxu0
    %v129 = vadd.f32 0.0, %v128
    %v130 = vpop.f32.mrb[0].mxu0
    %131 = vdwg.mxu0
    %v132 = vadd.f32 %v62, %v126
    %v133 = vadd.f32 %v63, %v129
    %vm134 = vcmask 785408
    %135 = vst.msk [vmem:[#allocation2] sm:$0xff] %vm134, %v132
    %136 = vst.msk [vmem:[#allocation2 + $0x8] sm:$0xff] %vm134, %v133
    // Predicated region
    $region30: #{transformer_forward.10} parent=1 // pred_check
      %p137 = pneg %p55
    $region31: #{transformer_forward.10} parent=1 // pred_check_branch
      %139 = sbr.rel (%p137) target = $region33
    $region32: #{transformer_forward.10} parent=1 // pred_region
      %v140 = vld [vmem:[#allocation2] sm:$0xff]
      %v141 = vld [vmem:[#allocation2 + $0x8] sm:$0xff]
      %v142 = vld [vmem:[#allocation8] sm:$0x1]
      %v144 = vlaneseq
      %v145 = vshrl.u32 %v144, 7
      %v146 = vsub.s32 0, %v145
      %v147 = vrot.slane %v142, %v146
      %v149 = vadd.f32 %v140, %v147
      %v150 = vadd.f32 %v141, %v147
      %v151 = vpack.c.bf16 %v150, %v149
      %v153 = vunpack.c.l.b16 %v151
      %v154 = vunpack.c.h.b16 %v151
      %v155 = vpack.c.b16 %v153, %v153
      %v156 = vpack.c.b16 %v154, %v154
      %vm159 = vcmask 781312
      %160 = vst.msk [vmem:[#allocation9] sm:$0xf] %vm159, %v155
      %161 = vst.msk [vmem:[#allocation9 + $0x4] sm:$0xf] %vm159, %v156
    $region33: #{transformer_forward.10} parent=1 // pred_fallthru
      _
    // Predicated region
    $region34: #{transformer_forward.10} parent=1 // pred_check
      _
    $region35: #{transformer_forward.10} parent=1 // pred_check_branch
      %163 = sbr.rel (0) target = $region37
    $region36: #{transformer_forward.10} parent=1 // pred_region
      %s165 = ssub.s32 128, 128
      %166 = vsyncadd [#allocation5], %s165
      %s167 = sshll.u32 [#allocation9], 4
      %s168 = int_to_ptr.vmem [resolvable:$true] %s167
      %173 = dma.vmem_to_hbm [thread:$0]  %s168, 128, %s3, [#allocation5], 64, 64, 4
    $region37: #{transformer_forward.10} parent=1 // pred_fallthru
      _
    // Predicated region
    $region38: #{transformer_forward.10} parent=1 // pred_check
      _
    $region39: #{transformer_forward.10} parent=1 // pred_check_branch
      %175 = sbr.rel (0) target = $region41
    $region40: #{transformer_forward.10} parent=1 // pred_region
      %176 = dma.done [#allocation5], 128
    $region41: #{transformer_forward.10} parent=1 // pred_fallthru
      _
    %177 = vsyncpa [#allocation4], 1
    %178 = vsyncpa [#allocation7], 1
    %179 = vsyncpa [#allocation5], 1

// kernel: transformer_forward.12
$region0: #{transformer_forward.12}
  #allocation0 [shape = 'u32[]', space=smem, size = 0x4, offset = 0x4, fixed_abs, tag = 'smem constant byte address 0x4 - core index']
  #allocation1 [shape = 'u32[144,128]{1,0:T(1,128)}', space=vmem, size = 0x12000, scoped, tag = 'internal scratch']
  #allocation2 [shape = 'f32[16,32]{1,0:T(8,128)}', space=vmem, size = 0x2000, scoped, tag = 'scratch operand']
  %s0 = inlined_call_operand.hbm [shape: bf16[16,32], index: 0, kind: input, shape index: {}]
  %s1 = inlined_call_operand.hbm [shape: bf16[32,32], index: 1, kind: input, shape index: {}]
  %s2 = inlined_call_operand.hbm [shape: f32[1,32], index: 2, kind: input, shape index: {}]
  %s3 = inlined_call_operand.hbm [shape: bf16[16,32], index: 3, kind: input, shape index: {}]
  %s4 = inlined_call_operand.hbm [shape: f32[1,32], index: 4, kind: input, shape index: {}]
  %s5 = inlined_call_operand.hbm [shape: f32[1,32], index: 5, kind: input, shape index: {}]
  %s6 = inlined_call_operand.hbm [shape: bf16[16,32], index: 6, kind: output, shape index: {}]
  %s7 = sld [smem:[#allocation0]]
  $region66: #{transformer_forward.12} parent=0
    _
  %s9 = ssub.s32 1, %s7
  %s10 = scalar_select 0, %s9, %s7
  $region1: #{transformer_forward.12} parent=0
    #allocation3 [shape = 'u8[4096]{0}', space=vmem, size = 0x1000, scoped, tag = 'input window, operand 0, single buffered']
    #allocation4 [shape = 's32[1]{0}', space=sflag, size = 0x4, scoped, tag = 'scoped memory for transformer_forward.12']
    #allocation5 [shape = 's32[1]{0}', space=sflag, size = 0x4, scoped, tag = 'scoped memory for transformer_forward.12']
    #allocation6 [shape = 'u8[8192]{0}', space=vmem, size = 0x2000, scoped, tag = 'input window, operand 1, single buffered']
    #allocation7 [shape = 's32[1]{0}', space=sflag, size = 0x4, scoped, tag = 'scoped memory for transformer_forward.12']
    #allocation8 [shape = 'u8[512]{0}', space=vmem, size = 0x400, scoped, tag = 'input window, operand 2, single buffered']
    #allocation9 [shape = 'u8[4096]{0}', space=vmem, size = 0x1000, scoped, tag = 'input window, operand 3, single buffered']
    #allocation10 [shape = 's32[1]{0}', space=sflag, size = 0x4, scoped, tag = 'scoped memory for transformer_forward.12']
    #allocation11 [shape = 'u8[512]{0}', space=vmem, size = 0x400, scoped, tag = 'input window, operand 4, single buffered']
    #allocation12 [shape = 'u8[512]{0}', space=vmem, size = 0x400, scoped, tag = 'input window, operand 5, single buffered']
    #allocation13 [shape = 's32[1]{0}', space=sflag, size = 0x4, scoped, tag = 'scoped memory for transformer_forward.12']
    #allocation14 [shape = 'u8[4096]{0}', space=vmem, size = 0x1000, scoped, tag = 'output window, operand 0, single buffered']
    %11 = vsyncpa [#allocation4], 0
    %12 = vsyncpa [#allocation7], 0
    %13 = vsyncpa [#allocation10], 0
    %14 = vsyncpa [#allocation13], 0
    %15 = vsyncpa [#allocation5], 0
    // Predicated region
    $region2: #{transformer_forward.12} parent=1 // pred_check
      _
    $region3: #{transformer_forward.12} parent=1 // pred_check_branch
      %17 = sbr.rel (0) target = $region5
    $region4: #{transformer_forward.12} parent=1 // pred_region
      %s19 = ssub.s32 128, 128
      %20 = vsyncadd [#allocation4], %s19
      %s21 = sshll.u32 [#allocation3], 4
      %s22 = int_to_ptr.vmem [resolvable:$true] %s21
      %27 = dma.hbm_to_vmem [thread:$0]  %s0, 128, %s22, [#allocation4], 64, 64, 4
    $region5: #{transformer_forward.12} parent=1 // pred_fallthru
      _
    // Predicated region
    $region6: #{transformer_forward.12} parent=1 // pred_check
      _
    $region7: #{transformer_forward.12} parent=1 // pred_check_branch
      %29 = sbr.rel (0) target = $region9
    $region8: #{transformer_forward.12} parent=1 // pred_region
      %s31 = ssub.s32 256, 256
      %32 = vsyncadd [#allocation7], %s31
      %s33 = sshll.u32 [#allocation6], 4
      %s34 = int_to_ptr.vmem [resolvable:$true] %s33
      %39 = dma.hbm_to_vmem [thread:$0]  %s1, 256, %s34, [#allocation7], 64, 64, 4
    $region9: #{transformer_forward.12} parent=1 // pred_fallthru
      _
    // Predicated region
    $region10: #{transformer_forward.12} parent=1 // pred_check
      _
    $region11: #{transformer_forward.12} parent=1 // pred_check_branch
      %41 = sbr.rel (0) target = $region13
    $region12: #{transformer_forward.12} parent=1 // pred_region
      %s43 = ssub.s32 16, 16
      %44 = vsyncadd [#allocation7], %s43
      %s46 = sshll.u32 [#allocation8], 4
      %s47 = int_to_ptr.vmem [resolvable:$true] %s46
      %49 = dma.hbm_to_vmem [thread:$0]  %s2, 16, %s47, [#allocation7]
    $region13: #{transformer_forward.12} parent=1 // pred_fallthru
      _
    // Predicated region
    $region14: #{transformer_forward.12} parent=1 // pred_check
      _
    $region15: #{transformer_forward.12} parent=1 // pred_check_branch
      %51 = sbr.rel (0) target = $region17
    $region16: #{transformer_forward.12} parent=1 // pred_region
      %s53 = ssub.s32 128, 128
      %54 = vsyncadd [#allocation10], %s53
      %s55 = sshll.u32 [#allocation9], 4
      %s56 = int_to_ptr.vmem [resolvable:$true] %s55
      %61 = dma.hbm_to_vmem [thread:$0]  %s3, 128, %s56, [#allocation10], 64, 64, 4
    $region17: #{transformer_forward.12} parent=1 // pred_fallthru
      _
    // Predicated region
    $region18: #{transformer_forward.12} parent=1 // pred_check
      _
    $region19: #{transformer_forward.12} parent=1 // pred_check_branch
      %63 = sbr.rel (0) target = $region21
    $region20: #{transformer_forward.12} parent=1 // pred_region
      %s65 = ssub.s32 16, 16
      %66 = vsyncadd [#allocation10], %s65
      %s68 = sshll.u32 [#allocation11], 4
      %s69 = int_to_ptr.vmem [resolvable:$true] %s68
      %71 = dma.hbm_to_vmem [thread:$0]  %s4, 16, %s69, [#allocation10]
    $region21: #{transformer_forward.12} parent=1 // pred_fallthru
      _
    // Predicated region
    $region22: #{transformer_forward.12} parent=1 // pred_check
      _
    $region23: #{transformer_forward.12} parent=1 // pred_check_branch
      %73 = sbr.rel (0) target = $region25
    $region24: #{transformer_forward.12} parent=1 // pred_region
      %s75 = ssub.s32 16, 16
      %76 = vsyncadd [#allocation13], %s75
      %s78 = sshll.u32 [#allocation12], 4
      %s79 = int_to_ptr.vmem [resolvable:$true] %s78
      %81 = dma.hbm_to_vmem [thread:$0]  %s5, 16, %s79, [#allocation13]
    $region25: #{transformer_forward.12} parent=1 // pred_fallthru
      _
    // Predicated region
    $region26: #{transformer_forward.12} parent=1 // pred_check
      _
    $region27: #{transformer_forward.12} parent=1 // pred_check_branch
      %83 = sbr.rel (0) target = $region29
    $region28: #{transformer_forward.12} parent=1 // pred_region
      %84 = dma.done [#allocation4], 128
    $region29: #{transformer_forward.12} parent=1 // pred_fallthru
      _
    // Predicated region
    $region30: #{transformer_forward.12} parent=1 // pred_check
      _
    $region31: #{transformer_forward.12} parent=1 // pred_check_branch
      %86 = sbr.rel (0) target = $region33
    $region32: #{transformer_forward.12} parent=1 // pred_region
      %87 = dma.done [#allocation7], 256
    $region33: #{transformer_forward.12} parent=1 // pred_fallthru
      _
    // Predicated region
    $region34: #{transformer_forward.12} parent=1 // pred_check
      _
    $region35: #{transformer_forward.12} parent=1 // pred_check_branch
      %89 = sbr.rel (0) target = $region37
    $region36: #{transformer_forward.12} parent=1 // pred_region
      %90 = dma.done [#allocation7], 16
    $region37: #{transformer_forward.12} parent=1 // pred_fallthru
      _
    // Predicated region
    $region38: #{transformer_forward.12} parent=1 // pred_check
      _
    $region39: #{transformer_forward.12} parent=1 // pred_check_branch
      %92 = sbr.rel (0) target = $region41
    $region40: #{transformer_forward.12} parent=1 // pred_region
      %93 = dma.done [#allocation10], 128
    $region41: #{transformer_forward.12} parent=1 // pred_fallthru
      _
    // Predicated region
    $region42: #{transformer_forward.12} parent=1 // pred_check
      _
    $region43: #{transformer_forward.12} parent=1 // pred_check_branch
      %95 = sbr.rel (0) target = $region45
    $region44: #{transformer_forward.12} parent=1 // pred_region
      %96 = dma.done [#allocation10], 16
    $region45: #{transformer_forward.12} parent=1 // pred_fallthru
      _
    // Predicated region
    $region46: #{transformer_forward.12} parent=1 // pred_check
      _
    $region47: #{transformer_forward.12} parent=1 // pred_check_branch
      %98 = sbr.rel (0) target = $region49
    $region48: #{transformer_forward.12} parent=1 // pred_region
      %99 = dma.done [#allocation13], 16
    $region49: #{transformer_forward.12} parent=1 // pred_fallthru
      _
    %p101 = scmp.eq.s32.totalorder 0, 0
    // Predicated region
    $region50: #{transformer_forward.12} parent=1 // pred_check
      %p102 = pneg %p101
    $region51: #{transformer_forward.12} parent=1 // pred_check_branch
      %104 = sbr.rel (%p102) target = $region53
    $region52: #{transformer_forward.12} parent=1 // pred_region
      %vm105 = vcmask 261120
      %106 = vst.msk [vmem:[#allocation2] sm:$0xff] %vm105, 0.0
      %107 = vst.msk [vmem:[#allocation2 + $0x8] sm:$0xff] %vm105, 0.0
    $region53: #{transformer_forward.12} parent=1 // pred_fallthru
      _
    %v108 = vld [vmem:[#allocation2] sm:$0xff]
    %v109 = vld [vmem:[#allocation2 + $0x8] sm:$0xff]
    %v110 = vld [vmem:[#allocation3] sm:$0xf]
    %v111 = vld [vmem:[#allocation3 + $0x4] sm:$0xf]
    %v112 = vld [vmem:[#allocation6] sm:$0xf]
    %v113 = vld [vmem:[#allocation6 + $0x4] sm:$0xf]
    %v114 = vld [vmem:[#allocation6 + $0x8] sm:$0xf]
    %v115 = vld [vmem:[#allocation6 + $0xc] sm:$0xf]
    %v118 = vunpack.c.l.b16 %v110
    %v119 = vunpack.c.l.b16 %v111
    %v120 = vpack.c.b16 %v119, %v118
    %v125 = vunpack.c.l.b16 %v112
    %v126 = vunpack.c.l.b16 %v113
    %v127 = vunpack.c.l.b16 %v114
    %v128 = vunpack.c.l.b16 %v115
    %v129 = vpack.c.b16 %v126, %v125
    %v130 = vpack.c.b16 %v128, %v127
    %vm133 = vcmask 261120
    %v135 = vsel %vm133, %v120, 0
    %137 = vmatprep.subr.bf16.mxu0 0
    %138 = vmatpush1.bf16.msra.mxu0 %v129
    %139 = vmatprep.subr.bf16.mxu0 0
    %140 = vmatpush1.bf16.msra.mxu0 %v130
    %141 = vmatprep.subr.bf16.mxu0 0
    %142 = vmatpush1.bf16.msra.mxu0 0
    %143 = vmatprep.subr.bf16.mxu0 0
    %144 = vmatpush1.bf16.msra.mxu0 0
    %145 = vmatprep.subr.bf16.mxu0 0
    %146 = vmatpush1.bf16.msra.mxu0 0
    %147 = vmatprep.subr.bf16.mxu0 0
    %148 = vmatpush1.bf16.msra.mxu0 0
    %149 = vmatprep.subr.bf16.mxu0 0
    %150 = vmatpush1.bf16.msra.mxu0 0
    %151 = vmatprep.subr.bf16.mxu0 0
    %152 = vmatpush1.bf16.msra.mxu0 0
    %153 = vmatprep.subr.bf16.mxu0 0
    %154 = vmatpush1.bf16.msra.mxu0 0
    %155 = vmatprep.subr.bf16.mxu0 0
    %156 = vmatpush1.bf16.msra.mxu0 0
    %157 = vmatprep.subr.bf16.mxu0 0
    %158 = vmatpush1.bf16.msra.mxu0 0
    %159 = vmatprep.subr.bf16.mxu0 0
    %160 = vmatpush1.bf16.msra.mxu0 0
    %161 = vmatprep.subr.bf16.mxu0 0
    %162 = vmatpush1.bf16.msra.mxu0 0
    %163 = vmatprep.subr.bf16.mxu0 0
    %164 = vmatpush1.bf16.msra.mxu0 0
    %165 = vmatprep.subr.bf16.mxu0 0
    %166 = vmatpush1.bf16.msra.mxu0 0
    %167 = vmatprep.subr.bf16.mxu0 0
    %168 = vmatpush1.bf16.msra.mxu0 0
    %169 = vmatprep.mubr.bf16.mxu0 0
    %170 = vmatmul.mubr.bf16.gmra.mrb[0].mxu0 %v135
    %v171 = vpop.f32.mrb[0].mxu0
    %v172 = vadd.f32 0.0, %v171
    %v173 = vpop.f32.mrb[0].mxu0
    %v174 = vpop.f32.mrb[0].mxu0
    %v175 = vadd.f32 0.0, %v174
    %v176 = vpop.f32.mrb[0].mxu0
    %177 = vdwg.mxu0
    %v178 = vadd.f32 %v108, %v172
    %v179 = vadd.f32 %v109, %v175
    %180 = vst.msk [vmem:[#allocation2] sm:$0xff] %vm133, %v178
    %181 = vst.msk [vmem:[#allocation2 + $0x8] sm:$0xff] %vm133, %v179
    // Predicated region
    $region54: #{transformer_forward.12} parent=1 // pred_check
      %p182 = pneg %p101
    $region55: #{transformer_forward.12} parent=1 // pred_check_branch
      %184 = sbr.rel (%p182) target = $region57
    $region56: #{transformer_forward.12} parent=1 // pred_region
      %v185 = vld [vmem:[#allocation2] sm:$0xff]
      %v186 = vld [vmem:[#allocation2 + $0x8] sm:$0xff]
      %v187 = vld [vmem:[#allocation8] sm:$0x1]
      %v189 = vlaneseq
      %v190 = vshrl.u32 %v189, 7
      %v191 = vsub.s32 0, %v190
      %v192 = vrot.slane %v187, %v191
      %v194 = vadd.f32 %v185, %v192
      %v195 = vadd.f32 %v186, %v192
      %v196 = vld [vmem:[#allocation9] sm:$0xf]
      %v197 = vld [vmem:[#allocation9 + $0x4] sm:$0xf]
      %v198 = vunpack.c.l.bf16 %v196
      %v199 = vunpack.c.l.bf16 %v197
      %v200 = vadd.f32 %v194, %v198
      %v201 = vadd.f32 %v195, %v199
      %v202 = vsel %vm133, %v200, 0.0
      %203 = vadd.xlane.f32.xlu0 %v202
      %v204 = vpop.xlane.xlu0 %203
      %v205 = vsel %vm133, %v201, 0.0
      %206 = vadd.xlane.f32.xlu0 %v205
      %v207 = vpop.xlane.xlu0 %206
      %v208 = vrcp.pop 32.0
      %v209 = vmul.f32 %v204, %v208
      %v210 = vmul.f32 %v207, %v208
      %v211 = vsub.f32 %v200, %v209
      %v212 = vsub.f32 %v201, %v210
      %v213 = vmul.f32 %v211, %v211
      %v214 = vmul.f32 %v212, %v212
      %v215 = vsel %vm133, %v213, 0.0
      %216 = vadd.xlane.f32.xlu0 %v215
      %v217 = vpop.xlane.xlu0 %216
      %v218 = vsel %vm133, %v214, 0.0
      %219 = vadd.xlane.f32.xlu0 %v218
      %v220 = vpop.xlane.xlu0 %219
      %v221 = vmul.f32 %v217, %v208
      %v222 = vmul.f32 %v220, %v208
      %v223 = vadd.f32 %v221, 1e-12
      %v224 = vadd.f32 %v222, 1e-12
      %v225 = vrsqrt.pop %v223
      %v226 = vrsqrt.pop %v224
      %v227 = vmul.f32 %v211, %v225
      %v228 = vmul.f32 %v212, %v226
      %v229 = vld [vmem:[#allocation11] sm:$0x1]
      %v231 = vlaneseq
      %v232 = vshrl.u32 %v231, 7
      %v233 = vsub.s32 0, %v232
      %v234 = vrot.slane %v229, %v233
      %v236 = vmul.f32 %v227, %v234
      %v237 = vmul.f32 %v228, %v234
      %v238 = vld [vmem:[#allocation12] sm:$0x1]
      %v240 = vlaneseq
      %v241 = vshrl.u32 %v240, 7
      %v242 = vsub.s32 0, %v241
      %v243 = vrot.slane %v238, %v242
      %v245 = vadd.f32 %v236, %v243
      %v246 = vadd.f32 %v237, %v243
      %v247 = vpack.c.bf16 %v246, %v245
      %v249 = vunpack.c.l.b16 %v247
      %v250 = vunpack.c.h.b16 %v247
      %v251 = vpack.c.b16 %v249, %v249
      %v252 = vpack.c.b16 %v250, %v250
      %vm255 = vcmask 257024
      %256 = vst.msk [vmem:[#allocation14] sm:$0xf] %vm255, %v251
      %257 = vst.msk [vmem:[#allocation14 + $0x4] sm:$0xf] %vm255, %v252
    $region57: #{transformer_forward.12} parent=1 // pred_fallthru
      _
    // Predicated region
    $region58: #{transformer_forward.12} parent=1 // pred_check
      _
    $region59: #{transformer_forward.12} parent=1 // pred_check_branch
      %259 = sbr.rel (0) target = $region61
    $region60: #{transformer_forward.12} parent=1 // pred_region
      %s261 = ssub.s32 128, 128
      %262 = vsyncadd [#allocation5], %s261
      %s263 = sshll.u32 [#allocation14], 4
      %s264 = int_to_ptr.vmem [resolvable:$true] %s263
      %269 = dma.vmem_to_hbm [thread:$0]  %s264, 128, %s6, [#allocation5], 64, 64, 4
    $region61: #{transformer_forward.12} parent=1 // pred_fallthru
      _
    // Predicated region
    $region62: #{transformer_forward.12} parent=1 // pred_check
      _
    $region63: #{transformer_forward.12} parent=1 // pred_check_branch
      %271 = sbr.rel (0) target = $region65
    $region64: #{transformer_forward.12} parent=1 // pred_region
      %272 = dma.done [#allocation5], 128
    $region65: #{transformer_forward.12} parent=1 // pred_fallthru
      _
    %273 = vsyncpa [#allocation4], 1
    %274 = vsyncpa [#allocation7], 1
    %275 = vsyncpa [#allocation10], 1
    %276 = vsyncpa [#allocation13], 1
    %277 = vsyncpa [#allocation5], 1

// kernel: transformer_forward.11
$region0: #{transformer_forward.11}
  #allocation0 [shape = 'u32[]', space=smem, size = 0x4, offset = 0x4, fixed_abs, tag = 'smem constant byte address 0x4 - core index']
  #allocation1 [shape = 'u32[144,128]{1,0:T(1,128)}', space=vmem, size = 0x12000, scoped, tag = 'internal scratch']
  #allocation2 [shape = 'f32[2,8,1]{2,1,0:T(8,128)}', space=vmem, size = 0x2000, scoped, tag = 'scratch operand']
  #allocation3 [shape = 'f32[2,8,1]{2,1,0:T(8,128)}', space=vmem, size = 0x2000, scoped, tag = 'scratch operand']
  #allocation4 [shape = 'f32[8,32]{1,0:T(8,128)}', space=vmem, size = 0x1000, scoped, tag = 'scratch operand']
  %s0 = inlined_call_operand.hbm [shape: bf16[2,8,96], index: 0, kind: input, shape index: {}, may-alias: {0,1,2}]
  %s1 = inlined_call_operand.hbm [shape: bf16[2,8,96], index: 1, kind: input, shape index: {}, may-alias: {0,1,2}]
  %s2 = inlined_call_operand.hbm [shape: bf16[2,8,96], index: 2, kind: input, shape index: {}, may-alias: {0,1,2}]
  %s3 = inlined_call_operand.hbm [shape: f32[2,1,8], index: 3, kind: input, shape index: {}]
  %s4 = inlined_call_operand.hbm [shape: bf16[2,8,32], index: 4, kind: output, shape index: {}]
  %s5 = sld [smem:[#allocation0]]
  $region73: #{transformer_forward.11} parent=0
    _
  %s7 = ssub.s32 1, %s5
  %s8 = scalar_select 0, %s7, %s5
  $region1: #{transformer_forward.11} parent=0
    #allocation5 [shape = 'u8[4096]{0}', space=vmem, size = 0x1000, scoped, tag = 'input window, operand 0']
    #allocation6 [shape = 's32[2]{0}', space=sflag, size = 0x8, scoped, tag = 'scoped memory for transformer_forward.11']
    #allocation7 [shape = 's32[2]{0}', space=sflag, size = 0x8, scoped, tag = 'scoped memory for transformer_forward.11']
    #allocation8 [shape = 'u8[4096]{0}', space=vmem, size = 0x1000, scoped, tag = 'input window, operand 1']
    #allocation9 [shape = 's32[2]{0}', space=sflag, size = 0x8, scoped, tag = 'scoped memory for transformer_forward.11']
    #allocation10 [shape = 'u8[4096]{0}', space=vmem, size = 0x1000, scoped, tag = 'input window, operand 2']
    #allocation11 [shape = 'u8[1024]{0}', space=vmem, size = 0x400, scoped, tag = 'input window, operand 3']
    #allocation12 [shape = 's32[2]{0}', space=sflag, size = 0x8, scoped, tag = 'scoped memory for transformer_forward.11']
    #allocation13 [shape = 'u8[4096]{0}', space=vmem, size = 0x1000, scoped, tag = 'output window, operand 0']
    %9 = vsyncpa [#allocation6], 0
    %s10 = scalar_lea.sflag [#allocation6], 1
    %11 = vsyncpa %s10, 0
    %12 = vsyncpa [#allocation9], 0
    %s13 = scalar_lea.sflag [#allocation9], 1
    %14 = vsyncpa %s13, 0
    %15 = vsyncpa [#allocation12], 0
    %s16 = scalar_lea.sflag [#allocation12], 1
    %17 = vsyncpa %s16, 0
    %18 = vsyncpa [#allocation7], 0
    %s19 = scalar_lea.sflag [#allocation7], 1
    %20 = vsyncpa %s19, 0
    loop: start=0, step=1, limit=4
    $region2: #{transformer_forward.11} parent=1 // loop_pre_header
      _
    $region3: #{transformer_forward.11} parent=1 // loop_header
      %s22 = sphi 0, %s26
      %p23 = scmp.ge.s32.totalorder %s22, 4
      %s29 = sphi 0, %s55
      %s30 = sphi 0, %s51
      %s31 = sphi 0, %s47
      %s32 = sphi 0, %s43
      %s33 = sphi 0, %s29
      %s34 = sphi 0, %s30
      %s35 = sphi 0, %s31
      %s36 = sphi 0, %s32
      %s37 = sphi 0, %s33
      %s38 = sphi 0, %s34
      %s39 = sphi 0, %s35
      %s40 = sphi 0, %s36
      %s60 = sphi 0, %s62
      %s63 = sphi 0, %s60
      %s64 = sphi 0, %s63
      %s80 = sphi 0, %s64
      %s88 = sphi 0, %s90
      %s91 = sphi 0, %s88
      %s92 = sphi 0, %s91
      %s108 = sphi 0, %s92
      %s116 = sphi 0, %s118
      %s119 = sphi 0, %s116
      %s120 = sphi 0, %s119
      %s136 = sphi 0, %s120
      %s144 = sphi 0, %s146
      %s147 = sphi 0, %s144
      %s148 = sphi 0, %s147
      %s164 = sphi 0, %s148
      %s174 = sphi 0, %s176
      %s177 = sphi 0, %s174
      %s178 = sphi 0, %s177
      %s194 = sphi 0, %s178
    $region4: #{transformer_forward.11} parent=1 // loop_header_branch
      %25 = sbr.rel (%p23) target = $region8
    $region5: #{transformer_forward.11} parent=1 // loop_body
      %s27 = ssub.s32 %s22, 1
      %s28 = ssub.s32 %s22, 2
      %s41 = sadd.s32 1, %s32
      %p42 = scmp.ge.s32.totalorder %s41, 1
      %s43 = scalar_select %p42, 0, %s41
      %s44 = sadd.s32 1, %s31
      %s45 = scalar_select %p42, %s44, %s31
      %p46 = scmp.ge.s32.totalorder %s45, 1
      %s47 = scalar_select %p46, 0, %s45
      %s48 = sadd.s32 1, %s30
      %s49 = scalar_select %p46, %s48, %s30
      %p50 = scmp.ge.s32.totalorder %s49, 1
      %s51 = scalar_select %p50, 0, %s49
      %s52 = sadd.s32 1, %s29
      %s53 = scalar_select %p50, %s52, %s29
      %p54 = scmp.ge.s32.totalorder %s53, 2
      %s55 = scalar_select %p54, 0, %s53
      %s56 = ssub.s32 %s29, %s55
      %s57 = ssub.s32 %s31, %s47
      %s58 = sor.u32 %s56, %s57
      %p59 = scmp.eq.s32.totalorder %s58, 0
      %s61 = sadd.s32 %s60, 1
      %s62 = scalar_select %p59, %s60, %s61
      %p65 = pneg %p59
      %p66 = scmp.eq.s32.totalorder %s22, 1
      %p67 = por %p65, %p66
      %p68 = scmp.ne.s32.totalorder %s60, %s63
      %p69 = scmp.eq.s32.totalorder %s22, 0
      %p70 = por %p68, %p69
      %p71 = scmp.ne.s32.totalorder %s60, %s63
      %p72 = scmp.eq.s32.totalorder %s27, 1
      %p73 = por %p71, %p72
      %p74 = scmp.ne.s32.totalorder %s63, %s64
      %p75 = scmp.eq.s32.totalorder %s27, 0
      %p76 = por %p74, %p75
      %p77 = scmp.ne.s32.totalorder %s63, %s64
      %p78 = scmp.eq.s32.totalorder %s28, 1
      %p79 = por %p77, %p78
      %p81 = scmp.ne.s32.totalorder %s64, %s80
      %p82 = scmp.eq.s32.totalorder %s28, 0
      %p83 = por %p81, %p82
      %s84 = ssub.s32 %s29, %s55
      %s85 = ssub.s32 %s32, %s43
      %s86 = sor.u32 %s84, %s85
      %p87 = scmp.eq.s32.totalorder %s86, 0
      %s89 = sadd.s32 %s88, 1
      %s90 = scalar_select %p87, %s88, %s89
      %p93 = pneg %p87
      %p94 = scmp.eq.s32.totalorder %s22, 1
      %p95 = por %p93, %p94
      %p96 = scmp.ne.s32.totalorder %s88, %s91
      %p97 = scmp.eq.s32.totalorder %s22, 0
      %p98 = por %p96, %p97
      %p99 = scmp.ne.s32.totalorder %s88, %s91
      %p100 = scmp.eq.s32.totalorder %s27, 1
      %p101 = por %p99, %p100
      %p102 = scmp.ne.s32.totalorder %s91, %s92
      %p103 = scmp.eq.s32.totalorder %s27, 0
      %p104 = por %p102, %p103
      %p105 = scmp.ne.s32.totalorder %s91, %s92
      %p106 = scmp.eq.s32.totalorder %s28, 1
      %p107 = por %p105, %p106
      %p109 = scmp.ne.s32.totalorder %s92, %s108
      %p110 = scmp.eq.s32.totalorder %s28, 0
      %p111 = por %p109, %p110
      %s112 = ssub.s32 %s29, %s55
      %s113 = ssub.s32 %s32, %s43
      %s114 = sor.u32 %s112, %s113
      %p115 = scmp.eq.s32.totalorder %s114, 0
      %s117 = sadd.s32 %s116, 1
      %s118 = scalar_select %p115, %s116, %s117
      %p121 = pneg %p115
      %p122 = scmp.eq.s32.totalorder %s22, 1
      %p123 = por %p121, %p122
      %p124 = scmp.ne.s32.totalorder %s116, %s119
      %p125 = scmp.eq.s32.totalorder %s22, 0
      %p126 = por %p124, %p125
      %p127 = scmp.ne.s32.totalorder %s116, %s119
      %p128 = scmp.eq.s32.totalorder %s27, 1
      %p129 = por %p127, %p128
      %p130 = scmp.ne.s32.totalorder %s119, %s120
      %p131 = scmp.eq.s32.totalorder %s27, 0
      %p132 = por %p130, %p131
      %p133 = scmp.ne.s32.totalorder %s119, %s120
      %p134 = scmp.eq.s32.totalorder %s28, 1
      %p135 = por %p133, %p134
      %p137 = scmp.ne.s32.totalorder %s120, %s136
      %p138 = scmp.eq.s32.totalorder %s28, 0
      %p139 = por %p137, %p138
      %s140 = ssub.s32 %s29, %s55
      %s141 = ssub.s32 %s32, %s43
      %s142 = sor.u32 %s140, %s141
      %p143 = scmp.eq.s32.totalorder %s142, 0
      %s145 = sadd.s32 %s144, 1
      %s146 = scalar_select %p143, %s144, %s145
      %p149 = pneg %p143
      %p150 = scmp.eq.s32.totalorder %s22, 1
      %p151 = por %p149, %p150
      %p152 = scmp.ne.s32.totalorder %s144, %s147
      %p153 = scmp.eq.s32.totalorder %s22, 0
      %p154 = por %p152, %p153
      %p155 = scmp.ne.s32.totalorder %s144, %s147
      %p156 = scmp.eq.s32.totalorder %s27, 1
      %p157 = por %p155, %p156
      %p158 = scmp.ne.s32.totalorder %s147, %s148
      %p159 = scmp.eq.s32.totalorder %s27, 0
      %p160 = por %p158, %p159
      %p161 = scmp.ne.s32.totalorder %s147, %s148
      %p162 = scmp.eq.s32.totalorder %s28, 1
      %p163 = por %p161, %p162
      %p165 = scmp.ne.s32.totalorder %s148, %s164
      %p166 = scmp.eq.s32.totalorder %s28, 0
      %p167 = por %p165, %p166
      %s168 = ssub.s32 %s29, %s55
      %s169 = ssub.s32 %s31, %s47
      %s170 = sor.u32 %s168, %s169
      %s171 = ssub.s32 %s30, %s51
      %s172 = sor.u32 %s170, %s171
      %p173 = scmp.eq.s32.totalorder %s172, 0
      %s175 = sadd.s32 %s174, 1
      %s176 = scalar_select %p173, %s174, %s175
      %p179 = pneg %p173
      %p180 = scmp.eq.s32.totalorder %s22, 1
      %p181 = por %p179, %p180
      %p182 = scmp.ne.s32.totalorder %s174, %s177
      %p183 = scmp.eq.s32.totalorder %s22, 0
      %p184 = por %p182, %p183
      %p185 = scmp.ne.s32.totalorder %s174, %s177
      %p186 = scmp.eq.s32.totalorder %s27, 1
      %p187 = por %p185, %p186
      %p188 = scmp.ne.s32.totalorder %s177, %s178
      %p189 = scmp.eq.s32.totalorder %s27, 0
      %p190 = por %p188, %p189
      %p191 = scmp.ne.s32.totalorder %s177, %s178
      %p192 = scmp.eq.s32.totalorder %s28, 1
      %p193 = por %p191, %p192
      %p195 = scmp.ne.s32.totalorder %s178, %s194
      %p196 = scmp.eq.s32.totalorder %s28, 0
      %p197 = por %p195, %p196
      %p198 = scmp.le.s32.totalorder 1, %s22
      %p199 = scmp.lt.s32.totalorder %s22, 3
      %p200 = pnand %p198, %p199
      %p201 = pneg %p200
      // Predicated region
      $region9: #{transformer_forward.11} parent=5 // pred_check
        _
      $region10: #{transformer_forward.11} parent=5 // pred_check_branch
        %203 = sbr.rel (%p200) target = $region12
      $region11: #{transformer_forward.11} parent=5 // pred_region
        %s204 = ssub.s32 %s22, 1
      $region12: #{transformer_forward.11} parent=5 // pred_fallthru
        _
      %p205 = scmp.lt.s32.totalorder %s22, 2
      // Predicated region
      $region13: #{transformer_forward.11} parent=5 // pred_check
        %p206 = pneg %p205
      $region14: #{transformer_forward.11} parent=5 // pred_check_branch
        %208 = sbr.rel (%p206) target = $region16
      $region15: #{transformer_forward.11} parent=5 // pred_region
        // Predicated region
        $region17: #{transformer_forward.11} parent=15 // pred_check
          %p209 = pneg %p70
        $region18: #{transformer_forward.11} parent=15 // pred_check_branch
          %211 = sbr.rel (%p209) target = $region20
        $region19: #{transformer_forward.11} parent=15 // pred_region
          %s212 = sand.u32 %s60, 1
          %s213 = scalar_lea.sflag [#allocation6], %s212
          %s214 = sand.u32 %s60, 1
          %s215 = smul.addr %s214, 4
          %s216 = scalar_lea.vmem [#allocation5], %s215
          %s218 = ssub.s32 64, 64
          %219 = vsyncadd %s213, %s218
          %s220 = sadd.s32 %s31, %s29
          %s221 = smul.addr %s220, 64
          %s222 = scalar_lea.hbm %s0, %s221
          %s224 = sshll.u32 %s216, 4
          %s225 = int_to_ptr.vmem [resolvable:$true] %s224
          %227 = dma.hbm_to_vmem [thread:$0]  %s222, 64, %s225, %s213
        $region20: #{transformer_forward.11} parent=15 // pred_fallthru
          _
        // Predicated region
        $region21: #{transformer_forward.11} parent=15 // pred_check
          %p228 = pneg %p98
        $region22: #{transformer_forward.11} parent=15 // pred_check_branch
          %230 = sbr.rel (%p228) target = $region24
        $region23: #{transformer_forward.11} parent=15 // pred_region
          %s231 = sand.u32 %s22, 1
          %s232 = scalar_lea.sflag [#allocation9], %s231
          %s233 = sand.u32 %s88, 1
          %s234 = smul.addr %s233, 4
          %s235 = scalar_lea.vmem [#allocation8], %s234
          %s237 = ssub.s32 64, 64
          %238 = vsyncadd %s232, %s237
          %s239 = sadd.s32 %s32, %s29
          %s240 = smul.addr %s239, 64
          %s241 = scalar_lea.hbm %s1, %s240
          %s243 = sshll.u32 %s235, 4
          %s244 = int_to_ptr.vmem [resolvable:$true] %s243
          %246 = dma.hbm_to_vmem [thread:$0]  %s241, 64, %s244, %s232
        $region24: #{transformer_forward.11} parent=15 // pred_fallthru
          _
        // Predicated region
        $region25: #{transformer_forward.11} parent=15 // pred_check
          %p247 = pneg %p126
        $region26: #{transformer_forward.11} parent=15 // pred_check_branch
          %249 = sbr.rel (%p247) target = $region28
        $region27: #{transformer_forward.11} parent=15 // pred_region
          %s250 = sand.u32 %s22, 1
          %s251 = scalar_lea.sflag [#allocation9], %s250
          %s252 = sand.u32 %s116, 1
          %s253 = smul.addr %s252, 4
          %s254 = scalar_lea.vmem [#allocation10], %s253
          %s256 = ssub.s32 64, 64
          %257 = vsyncadd %s251, %s256
          %s258 = sadd.s32 %s32, %s29
          %s259 = smul.addr %s258, 64
          %s260 = scalar_lea.hbm %s2, %s259
          %s262 = sshll.u32 %s254, 4
          %s263 = int_to_ptr.vmem [resolvable:$true] %s262
          %265 = dma.hbm_to_vmem [thread:$0]  %s260, 64, %s263, %s251
        $region28: #{transformer_forward.11} parent=15 // pred_fallthru
          _
        // Predicated region
        $region29: #{transformer_forward.11} parent=15 // pred_check
          %p266 = pneg %p154
        $region30: #{transformer_forward.11} parent=15 // pred_check_branch
          %268 = sbr.rel (%p266) target = $region32
        $region31: #{transformer_forward.11} parent=15 // pred_region
          %s269 = sand.u32 %s144, 1
          %s270 = scalar_lea.sflag [#allocation12], %s269
          %s271 = sand.u32 %s144, 1
          %s272 = scalar_lea.vmem [#allocation11], %s271
          %s274 = ssub.s32 16, 16
          %275 = vsyncadd %s270, %s274
          %s276 = sadd.s32 %s32, %s29
          %s277 = smul.addr %s276, 16
          %s278 = scalar_lea.hbm %s3, %s277
          %s280 = sshll.u32 %s272, 4
          %s281 = int_to_ptr.vmem [resolvable:$true] %s280
          %283 = dma.hbm_to_vmem [thread:$0]  %s278, 16, %s281, %s270
        $region32: #{transformer_forward.11} parent=15 // pred_fallthru
          _
      $region16: #{transformer_forward.11} parent=5 // pred_fallthru
        _
      %p284 = scmp.le.s32.totalorder 1, %s22
      %p285 = scmp.lt.s32.totalorder %s22, 3
      %p286 = pnand %p284, %p285
      %p287 = pneg %p286
      // Predicated region
      $region33: #{transformer_forward.11} parent=5 // pred_check
        _
      $region34: #{transformer_forward.11} parent=5 // pred_check_branch
        %289 = sbr.rel (%p286) target = $region36
      $region35: #{transformer_forward.11} parent=5 // pred_region
        %s290 = ssub.s32 %s22, 1
        %s291 = sand.u32 %s63, 1
        %s292 = scalar_lea.sflag [#allocation6], %s291
        %s293 = sand.u32 %s63, 1
        %s294 = smul.addr %s293, 4
        %s295 = scalar_lea.vmem [#allocation5], %s294
        // Predicated region
        $region37: #{transformer_forward.11} parent=35 // pred_check
          %p296 = pneg %p76
        $region38: #{transformer_forward.11} parent=35 // pred_check_branch
          %298 = sbr.rel (%p296) target = $region40
        $region39: #{transformer_forward.11} parent=35 // pred_region
          %299 = dma.done %s292, 64
        $region40: #{transformer_forward.11} parent=35 // pred_fallthru
          _
        %s300 = sand.u32 %s27, 1
        %s301 = scalar_lea.sflag [#allocation9], %s300
        %s302 = sand.u32 %s91, 1
        %s303 = smul.addr %s302, 4
        %s304 = scalar_lea.vmem [#allocation8], %s303
        // Predicated region
        $region41: #{transformer_forward.11} parent=35 // pred_check
          %p305 = pneg %p104
        $region42: #{transformer_forward.11} parent=35 // pred_check_branch
          %307 = sbr.rel (%p305) target = $region44
        $region43: #{transformer_forward.11} parent=35 // pred_region
          %308 = dma.done %s301, 64
        $region44: #{transformer_forward.11} parent=35 // pred_fallthru
          _
        %s309 = sand.u32 %s27, 1
        %s310 = scalar_lea.sflag [#allocation9], %s309
        %s311 = sand.u32 %s119, 1
        %s312 = smul.addr %s311, 4
        %s313 = scalar_lea.vmem [#allocation10], %s312
        // Predicated region
        $region45: #{transformer_forward.11} parent=35 // pred_check
          %p314 = pneg %p132
        $region46: #{transformer_forward.11} parent=35 // pred_check_branch
          %316 = sbr.rel (%p314) target = $region48
        $region47: #{transformer_forward.11} parent=35 // pred_region
          %317 = dma.done %s310, 64
        $region48: #{transformer_forward.11} parent=35 // pred_fallthru
          _
        %s318 = sand.u32 %s147, 1
        %s319 = scalar_lea.sflag [#allocation12], %s318
        %s320 = sand.u32 %s147, 1
        %s321 = scalar_lea.vmem [#allocation11], %s320
        // Predicated region
        $region49: #{transformer_forward.11} parent=35 // pred_check
          %p322 = pneg %p160
        $region50: #{transformer_forward.11} parent=35 // pred_check_branch
          %324 = sbr.rel (%p322) target = $region52
        $region51: #{transformer_forward.11} parent=35 // pred_region
          %325 = dma.done %s319, 16
        $region52: #{transformer_forward.11} parent=35 // pred_fallthru
          _
        %s326 = sand.u32 %s63, 1
        %s327 = scalar_lea.sflag [#allocation6], %s326
        %s328 = sand.u32 %s63, 1
        %s329 = smul.addr %s328, 4
        %s330 = scalar_lea.vmem [#allocation5], %s329
        %p331 = pneg %p76
        %p332 = pneg %p73
        %s333 = sand.u32 %s27, 1
        %s334 = scalar_lea.sflag [#allocation9], %s333
        %s335 = sand.u32 %s91, 1
        %s336 = smul.addr %s335, 4
        %s337 = scalar_lea.vmem [#allocation8], %s336
        %p338 = pneg %p104
        %p339 = pneg %p101
        %s340 = sand.u32 %s27, 1
        %s341 = scalar_lea.sflag [#allocation9], %s340
        %s342 = sand.u32 %s119, 1
        %s343 = smul.addr %s342, 4
        %s344 = scalar_lea.vmem [#allocation10], %s343
        %p345 = pneg %p132
        %p346 = pneg %p129
        %s347 = sand.u32 %s147, 1
        %s348 = scalar_lea.sflag [#allocation12], %s347
        %s349 = sand.u32 %s147, 1
        %s350 = scalar_lea.vmem [#allocation11], %s349
        %p351 = pneg %p160
        %p352 = pneg %p157
        %p353 = pneg %p190
        %p354 = pneg %p187
        %s355 = sand.u32 %s177, 1
        %s356 = scalar_lea.sflag [#allocation7], %s355
        %s357 = sand.u32 %s177, 1
        %s358 = smul.addr %s357, 4
        %s359 = scalar_lea.vmem [#allocation13], %s358
        %p361 = scmp.eq.s32.totalorder %s36, 0
        // Predicated region
        $region53: #{transformer_forward.11} parent=35 // pred_check
          %p362 = pneg %p361
        $region54: #{transformer_forward.11} parent=35 // pred_check_branch
          %364 = sbr.rel (%p362) target = $region56
        $region55: #{transformer_forward.11} parent=35 // pred_region
          %vm365 = vcmask 7168
          %366 = vst.msk [vmem:[#allocation2] sm:$0xff] %vm365, -1e+30
          %367 = vst.msk [vmem:[#allocation2 + $0x8] sm:$0xff] %vm365, -1e+30
          %368 = vst.msk [vmem:[#allocation3] sm:$0xff] %vm365, 0.0
          %369 = vst.msk [vmem:[#allocation3 + $0x8] sm:$0xff] %vm365, 0.0
          %vm370 = vcmask 261120
          %371 = vst.msk [vmem:[#allocation4] sm:$0xff] %vm370, 0.0
        $region56: #{transformer_forward.11} parent=35 // pred_fallthru
          _
        %v372 = vld [vmem:[%s321] sm:$0x1]
        %v373 = vsub.f32 1.0, %v372
        %v374 = vmul.f32 %v373, -10000.0
        %v375 = vld [vmem:[%s295] sm:$0xf]
        %v376 = vld [vmem:[%s304] sm:$0xf]
        %v377 = vld [vmem:[%s313] sm:$0xf]
        %v379 = vunpack.c.l.b16 %v376
        %v380 = vpack.c.b16 %v379, %v379
        %381 = vrot.lane.b32.xlu0 %v380, 96
        %v382 = vpop.permute.xlu0 %381
        %vm383 = vcmask 130048
        %v385 = vsel %vm383, %v375, 0
        %v388 = vsel %vm383, %v382, 0
        %390 = vmatprep.subr.bf16.mxu0 0
        %391 = vmatpush1.bf16.xpose.msra.mxu0 %v388
        %392 = vmatprep.subr.bf16.mxu0 0
        %393 = vmatpush1.bf16.xpose.msra.mxu0 0
        %394 = vmatprep.subr.bf16.mxu0 0
        %395 = vmatpush1.bf16.xpose.msra.mxu0 0
        %396 = vmatprep.subr.bf16.mxu0 0
        %397 = vmatpush1.bf16.xpose.msra.mxu0 0
        %398 = vmatprep.subr.bf16.mxu0 0
        %399 = vmatpush1.bf16.xpose.msra.mxu0 0
        %400 = vmatprep.subr.bf16.mxu0 0
        %401 = vmatpush1.bf16.xpose.msra.mxu0 0
        %402 = vmatprep.subr.bf16.mxu0 0
        %403 = vmatpush1.bf16.xpose.msra.mxu0 0
        %404 = vmatprep.subr.bf16.mxu0 0
        %405 = vmatpush1.bf16.xpose.msra.mxu0 0
        %406 = vmatprep.subr.bf16.mxu0 0
        %407 = vmatpush1.bf16.xpose.msra.mxu0 0
        %408 = vmatprep.subr.bf16.mxu0 0
        %409 = vmatpush1.bf16.xpose.msra.mxu0 0
        %410 = vmatprep.subr.bf16.mxu0 0
        %411 = vmatpush1.bf16.xpose.msra.mxu0 0
        %412 = vmatprep.subr.bf16.mxu0 0
        %413 = vmatpush1.bf16.xpose.msra.mxu0 0
        %414 = vmatprep.subr.bf16.mxu0 0
        %415 = vmatpush1.bf16.xpose.msra.mxu0 0
        %416 = vmatprep.subr.bf16.mxu0 0
        %417 = vmatpush1.bf16.xpose.msra.mxu0 0
        %418 = vmatprep.subr.bf16.mxu0 0
        %419 = vmatpush1.bf16.xpose.msra.mxu0 0
        %420 = vmatprep.subr.bf16.mxu0 0
        %421 = vmatpush1.bf16.xpose.msra.mxu0 0
        %422 = vmatprep.mubr.bf16.mxu0 0
        %423 = vmatmul.mubr.bf16.gmra.mrb[0].mxu0 %v385
        %v424 = vpop.f32.mrb[0].mxu0
        %v425 = vadd.f32 0.0, %v424
        %v426 = vpop.f32.mrb[0].mxu0
        %v427 = vpop.f32.mrb[0].mxu0
        %v428 = vpop.f32.mrb[0].mxu0
        %429 = vdwg.mxu0
        %v430 = vmul.f32 %v425, 0.25
        %v432 = vlaneseq
        %v433 = vshrl.u32 %v432, 7
        %v434 = vsub.s32 0, %v433
        %v435 = vrot.slane %v374, %v434
        %v437 = vadd.f32 %v430, %v435
        %v438 = vld [vmem:[#allocation2] sm:$0xff]
        %vm439 = vcmask 64512
        %v440 = vsel %vm439, %v437, -inf
        %441 = vmax.xlane.f32.xlu0 %v440
        %v442 = vpop.xlane.xlu0 %441
        %v443 = vmax.f32 %v438, %v442
        %v444 = vsub.f32 %v438, %v443
        %v445 = vmul.f32 %v444, 1.442695
        %v446 = vpow.pop %v445
        %448 = vset.pattern.permute.xlu0 0
        %449 = vperm.xlu0 %448, %v443
        %v450 = vpop.permute.xlu0 %449
        %v452 = vsub.f32 %v437, %v450
        %v453 = vmul.f32 %v452, 1.442695
        %v454 = vpow.pop %v453
        %v455 = vld [vmem:[#allocation3] sm:$0xff]
        %v456 = vmul.f32 %v446, %v455
        %v457 = vsel %vm439, %v454, 0.0
        %458 = vadd.xlane.f32.xlu0 %v457
        %v459 = vpop.xlane.xlu0 %458
        %v460 = vadd.f32 %v456, %v459
        %vm461 = vcmask 7168
        %462 = vst.msk [vmem:[#allocation3] sm:$0xff] %vm461, %v460
        %v463 = vld [vmem:[#allocation4] sm:$0xff]
        %465 = vset.pattern.permute.xlu0 0
        %466 = vperm.xlu0 %465, %v446
        %v467 = vpop.permute.xlu0 %466
        %v469 = vmul.f32 %v467, %v463
        %v470 = vpack.c.bf16 %v454, %v454
        %v472 = vunpack.c.l.b16 %v377
        %v473 = vpack.c.b16 %v472, %v472
        %474 = vrot.lane.b32.xlu0 %v473, 64
        %v475 = vpop.permute.xlu0 %474
        %v477 = vsel %vm439, %v470, 0
        %vm479 = vcmask 1043456
        %v481 = vsel %vm479, %v475, 0
        %483 = vmatprep.subr.bf16.mxu0 0
        %484 = vmatpush1.bf16.msra.mxu0 %v481
        %485 = vmatprep.subr.bf16.mxu0 0
        %486 = vmatpush1.bf16.msra.mxu0 0
        %487 = vmatprep.subr.bf16.mxu0 0
        %488 = vmatpush1.bf16.msra.mxu0 0
        %489 = vmatprep.subr.bf16.mxu0 0
        %490 = vmatpush1.bf16.msra.mxu0 0
        %491 = vmatprep.subr.bf16.mxu0 0
        %492 = vmatpush1.bf16.msra.mxu0 0
        %493 = vmatprep.subr.bf16.mxu0 0
        %494 = vmatpush1.bf16.msra.mxu0 0
        %495 = vmatprep.subr.bf16.mxu0 0
        %496 = vmatpush1.bf16.msra.mxu0 0
        %497 = vmatprep.subr.bf16.mxu0 0
        %498 = vmatpush1.bf16.msra.mxu0 0
        %499 = vmatprep.subr.bf16.mxu0 0
        %500 = vmatpush1.bf16.msra.mxu0 0
        %501 = vmatprep.subr.bf16.mxu0 0
        %502 = vmatpush1.bf16.msra.mxu0 0
        %503 = vmatprep.subr.bf16.mxu0 0
        %504 = vmatpush1.bf16.msra.mxu0 0
        %505 = vmatprep.subr.bf16.mxu0 0
        %506 = vmatpush1.bf16.msra.mxu0 0
        %507 = vmatprep.subr.bf16.mxu0 0
        %508 = vmatpush1.bf16.msra.mxu0 0
        %509 = vmatprep.subr.bf16.mxu0 0
        %510 = vmatpush1.bf16.msra.mxu0 0
        %511 = vmatprep.subr.bf16.mxu0 0
        %512 = vmatpush1.bf16.msra.mxu0 0
        %513 = vmatprep.subr.bf16.mxu0 0
        %514 = vmatpush1.bf16.msra.mxu0 0
        %515 = vmatprep.mubr.bf16.mxu0 0
        %516 = vmatmul.mubr.bf16.gmra.mrb[0].mxu0 %v477
        %v517 = vpop.f32.mrb[0].mxu0
        %v518 = vadd.f32 0.0, %v517
        %v519 = vpop.f32.mrb[0].mxu0
        %v520 = vpop.f32.mrb[0].mxu0
        %v521 = vpop.f32.mrb[0].mxu0
        %522 = vdwg.mxu0
        %v523 = vadd.f32 %v469, %v518
        %524 = vst.msk [vmem:[#allocation4] sm:$0xff] %vm383, %v523
        %525 = vst.msk [vmem:[#allocation2] sm:$0xff] %vm461, %v443
        %v526 = vld [vmem:[%s295] sm:$0xf]
        %v527 = vld [vmem:[%s304] sm:$0xf]
        %v528 = vld [vmem:[%s313] sm:$0xf]
        %v530 = vunpack.c.l.b16 %v526
        %v531 = vpack.c.b16 %v530, %v530
        %532 = vrot.lane.b32.xlu0 %v531, 112
        %v533 = vpop.permute.xlu0 %532
        %v535 = vunpack.c.l.b16 %v527
        %v536 = vpack.c.b16 %v535, %v535
        %537 = vrot.lane.b32.xlu0 %v536, 80
        %v538 = vpop.permute.xlu0 %537
        %v540 = vsel %vm383, %v533, 0
        %v543 = vsel %vm383, %v538, 0
        %545 = vmatprep.subr.bf16.mxu0 0
        %546 = vmatpush1.bf16.xpose.msra.mxu0 %v543
        %547 = vmatprep.subr.bf16.mxu0 0
        %548 = vmatpush1.bf16.xpose.msra.mxu0 0
        %549 = vmatprep.subr.bf16.mxu0 0
        %550 = vmatpush1.bf16.xpose.msra.mxu0 0
        %551 = vmatprep.subr.bf16.mxu0 0
        %552 = vmatpush1.bf16.xpose.msra.mxu0 0
        %553 = vmatprep.subr.bf16.mxu0 0
        %554 = vmatpush1.bf16.xpose.msra.mxu0 0
        %555 = vmatprep.subr.bf16.mxu0 0
        %556 = vmatpush1.bf16.xpose.msra.mxu0 0
        %557 = vmatprep.subr.bf16.mxu0 0
        %558 = vmatpush1.bf16.xpose.msra.mxu0 0
        %559 = vmatprep.subr.bf16.mxu0 0
        %560 = vmatpush1.bf16.xpose.msra.mxu0 0
        %561 = vmatprep.subr.bf16.mxu0 0
        %562 = vmatpush1.bf16.xpose.msra.mxu0 0
        %563 = vmatprep.subr.bf16.mxu0 0
        %564 = vmatpush1.bf16.xpose.msra.mxu0 0
        %565 = vmatprep.subr.bf16.mxu0 0
        %566 = vmatpush1.bf16.xpose.msra.mxu0 0
        %567 = vmatprep.subr.bf16.mxu0 0
        %568 = vmatpush1.bf16.xpose.msra.mxu0 0
        %569 = vmatprep.subr.bf16.mxu0 0
        %570 = vmatpush1.bf16.xpose.msra.mxu0 0
        %571 = vmatprep.subr.bf16.mxu0 0
        %572 = vmatpush1.bf16.xpose.msra.mxu0 0
        %573 = vmatprep.subr.bf16.mxu0 0
        %574 = vmatpush1.bf16.xpose.msra.mxu0 0
        %575 = vmatprep.subr.bf16.mxu0 0
        %576 = vmatpush1.bf16.xpose.msra.mxu0 0
        %577 = vmatprep.mubr.bf16.mxu0 0
        %578 = vmatmul.mubr.bf16.gmra.mrb[0].mxu0 %v540
        %v579 = vpop.f32.mrb[0].mxu0
        %v580 = vadd.f32 0.0, %v579
        %v581 = vpop.f32.mrb[0].mxu0
        %v582 = vpop.f32.mrb[0].mxu0
        %v583 = vpop.f32.mrb[0].mxu0
        %584 = vdwg.mxu0
        %v585 = vmul.f32 %v580, 0.25
        %v586 = vadd.f32 %v585, %v435
        %s587 = scalar_lea.vmem [#allocation2], 8
        %v588 = vld [vmem:[%s587] sm:$0xff]
        %v589 = vsel %vm439, %v586, -inf
        %590 = vmax.xlane.f32.xlu0 %v589
        %v591 = vpop.xlane.xlu0 %590
        %v592 = vmax.f32 %v588, %v591
        %v593 = vsub.f32 %v588, %v592
        %v594 = vmul.f32 %v593, 1.442695
        %v595 = vpow.pop %v594
        %597 = vset.pattern.permute.xlu0 0
        %598 = vperm.xlu0 %597, %v592
        %v599 = vpop.permute.xlu0 %598
        %v601 = vsub.f32 %v586, %v599
        %v602 = vmul.f32 %v601, 1.442695
        %v603 = vpow.pop %v602
        %s604 = scalar_lea.vmem [#allocation3], 8
        %v605 = vld [vmem:[%s604] sm:$0xff]
        %v606 = vmul.f32 %v595, %v605
        %v607 = vsel %vm439, %v603, 0.0
        %608 = vadd.xlane.f32.xlu0 %v607
        %v609 = vpop.xlane.xlu0 %608
        %v610 = vadd.f32 %v606, %v609
        %611 = vst.msk [vmem:[%s604] sm:$0xff] %vm461, %v610
        %v612 = vld [vmem:[#allocation4] sm:$0xff]
        %614 = vset.pattern.permute.xlu0 0
        %615 = vperm.xlu0 %614, %v595
        %v616 = vpop.permute.xlu0 %615
        %v618 = vmul.f32 %v616, %v612
        %v619 = vpack.c.bf16 %v603, %v603
        %v621 = vunpack.c.l.b16 %v528
        %v622 = vpack.c.b16 %v621, %v621
        %623 = vrot.lane.b32.xlu0 %v622, 48
        %v624 = vpop.permute.xlu0 %623
        %v626 = vsel %vm439, %v619, 0
        %v629 = vsel %vm479, %v624, 0
        %631 = vmatprep.subr.bf16.mxu0 0
        %632 = vmatpush1.bf16.msra.mxu0 %v629
        %633 = vmatprep.subr.bf16.mxu0 0
        %634 = vmatpush1.bf16.msra.mxu0 0
        %635 = vmatprep.subr.bf16.mxu0 0
        %636 = vmatpush1.bf16.msra.mxu0 0
        %637 = vmatprep.subr.bf16.mxu0 0
        %638 = vmatpush1.bf16.msra.mxu0 0
        %639 = vmatprep.subr.bf16.mxu0 0
        %640 = vmatpush1.bf16.msra.mxu0 0
        %641 = vmatprep.subr.bf16.mxu0 0
        %642 = vmatpush1.bf16.msra.mxu0 0
        %643 = vmatprep.subr.bf16.mxu0 0
        %644 = vmatpush1.bf16.msra.mxu0 0
        %645 = vmatprep.subr.bf16.mxu0 0
        %646 = vmatpush1.bf16.msra.mxu0 0
        %647 = vmatprep.subr.bf16.mxu0 0
        %648 = vmatpush1.bf16.msra.mxu0 0
        %649 = vmatprep.subr.bf16.mxu0 0
        %650 = vmatpush1.bf16.msra.mxu0 0
        %651 = vmatprep.subr.bf16.mxu0 0
        %652 = vmatpush1.bf16.msra.mxu0 0
        %653 = vmatprep.subr.bf16.mxu0 0
        %654 = vmatpush1.bf16.msra.mxu0 0
        %655 = vmatprep.subr.bf16.mxu0 0
        %656 = vmatpush1.bf16.msra.mxu0 0
        %657 = vmatprep.subr.bf16.mxu0 0
        %658 = vmatpush1.bf16.msra.mxu0 0
        %659 = vmatprep.subr.bf16.mxu0 0
        %660 = vmatpush1.bf16.msra.mxu0 0
        %661 = vmatprep.subr.bf16.mxu0 0
        %662 = vmatpush1.bf16.msra.mxu0 0
        %663 = vmatprep.mubr.bf16.mxu0 0
        %664 = vmatmul.mubr.bf16.gmra.mrb[0].mxu0 %v626
        %v665 = vpop.f32.mrb[0].mxu0
        %v666 = vadd.f32 0.0, %v665
        %v667 = vpop.f32.mrb[0].mxu0
        %v668 = vpop.f32.mrb[0].mxu0
        %v669 = vpop.f32.mrb[0].mxu0
        %670 = vdwg.mxu0
        %672 = vrot.lane.b32.xlu0 %v666, 16
        %v673 = vpop.permute.xlu0 %672
        %v675 = vadd.f32 %v618, %v673
        %vm676 = vcmask 261248
        %677 = vst.msk [vmem:[#allocation4] sm:$0xff] %vm676, %v675
        %678 = vst.msk [vmem:[%s587] sm:$0xff] %vm461, %v592
        // Predicated region
        $region57: #{transformer_forward.11} parent=35 // pred_check
          %p679 = pneg %p361
        $region58: #{transformer_forward.11} parent=35 // pred_check_branch
          %681 = sbr.rel (%p679) target = $region60
        $region59: #{transformer_forward.11} parent=35 // pred_region
          %v682 = vld [vmem:[#allocation4] sm:$0xff]
          %v683 = vld [vmem:[#allocation3] sm:$0xff]
          %v684 = vrcp.pop %v683
          %686 = vset.pattern.permute.xlu0 0
          %687 = vperm.xlu0 %686, %v684
          %v688 = vpop.permute.xlu0 %687
          %v690 = vmul.f32 %v682, %v688
          %691 = vst.msk [vmem:[#allocation4] sm:$0xff] %vm383, %v690
          %v692 = vld [vmem:[#allocation4] sm:$0xff]
          %v693 = vld [vmem:[%s604] sm:$0xff]
          %v694 = vrcp.pop %v693
          %696 = vset.pattern.permute.xlu0 0
          %697 = vperm.xlu0 %696, %v694
          %v698 = vpop.permute.xlu0 %697
          %v700 = vmul.f32 %v692, %v698
          %701 = vst.msk [vmem:[#allocation4] sm:$0xff] %vm676, %v700
          %v702 = vld [vmem:[#allocation4] sm:$0xff]
          %v703 = vpack.c.bf16 %v702, %v702
          %vm704 = vcmask 257024
          %705 = vst.msk [vmem:[%s359] sm:$0xf] %vm704, %v703
        $region60: #{transformer_forward.11} parent=35 // pred_fallthru
          _
        %s706 = sand.u32 %s177, 1
        %s707 = scalar_lea.sflag [#allocation7], %s706
        %s708 = sand.u32 %s177, 1
        %s709 = smul.addr %s708, 4
        %s710 = scalar_lea.vmem [#allocation13], %s709
        // Predicated region
        $region61: #{transformer_forward.11} parent=35 // pred_check
          %p711 = pneg %p187
        $region62: #{transformer_forward.11} parent=35 // pred_check_branch
          %713 = sbr.rel (%p711) target = $region64
        $region63: #{transformer_forward.11} parent=35 // pred_region
          %s715 = ssub.s32 64, 64
          %716 = vsyncadd %s707, %s715
          %s717 = sadd.s32 %s34, %s35
          %s718 = sadd.s32 %s717, %s33
          %s719 = smul.addr %s718, 64
          %s720 = scalar_lea.hbm %s4, %s719
          %s722 = sshll.u32 %s710, 4
          %s723 = int_to_ptr.vmem [resolvable:$true] %s722
          %725 = dma.vmem_to_hbm [thread:$0]  %s723, 64, %s720, %s707
        $region64: #{transformer_forward.11} parent=35 // pred_fallthru
          _
      $region36: #{transformer_forward.11} parent=5 // pred_fallthru
        _
      %p726 = scmp.le.s32.totalorder 2, %s22
      // Predicated region
      $region65: #{transformer_forward.11} parent=5 // pred_check
        %p727 = pneg %p726
      $region66: #{transformer_forward.11} parent=5 // pred_check_branch
        %729 = sbr.rel (%p727) target = $region68
      $region67: #{transformer_forward.11} parent=5 // pred_region
        %s730 = ssub.s32 %s22, 2
        // Predicated region
        $region69: #{transformer_forward.11} parent=67 // pred_check
          %p731 = pneg %p193
        $region70: #{transformer_forward.11} parent=67 // pred_check_branch
          %733 = sbr.rel (%p731) target = $region72
        $region71: #{transformer_forward.11} parent=67 // pred_region
          %s734 = sand.u32 %s178, 1
          %s735 = scalar_lea.sflag [#allocation7], %s734
          %s736 = sand.u32 %s178, 1
          %s737 = smul.addr %s736, 4
          %s738 = scalar_lea.vmem [#allocation13], %s737
          %739 = dma.done %s735, 64
        $region72: #{transformer_forward.11} parent=67 // pred_fallthru
          _
      $region68: #{transformer_forward.11} parent=5 // pred_fallthru
        _
    $region6: #{transformer_forward.11} parent=1 // loop_footer
      %s26 = sadd.s32 1, %s22
    $region7: #{transformer_forward.11} parent=1 // loop_footer_branch
      %21 = sbr.rel target = $region3
    $region8: #{transformer_forward.11} parent=1 // loop_exit
      _
    %740 = vsyncpa [#allocation6], 1
    %s741 = scalar_lea.sflag [#allocation6], 1
    %742 = vsyncpa %s741, 1
    %743 = vsyncpa [#allocation9], 1
    %s744 = scalar_lea.sflag [#allocation9], 1
    %745 = vsyncpa %s744, 1
    %746 = vsyncpa [#allocation12], 1
    %s747 = scalar_lea.sflag [#allocation12], 1
    %748 = vsyncpa %s747, 1
    %749 = vsyncpa [#allocation7], 1
    %s750 = scalar_lea.sflag [#allocation7], 1
    %751 = vsyncpa %s750, 1

// kernel: transformer_forward.13
$region0: #{transformer_forward.13}
  #allocation0 [shape = 'u32[]', space=smem, size = 0x4, offset = 0x4, fixed_abs, tag = 'smem constant byte address 0x4 - core index']
  #allocation1 [shape = 'u32[144,128]{1,0:T(1,128)}', space=vmem, size = 0x12000, scoped, tag = 'internal scratch']
  #allocation2 [shape = 'f32[16,32]{1,0:T(8,128)}', space=vmem, size = 0x2000, scoped, tag = 'scratch operand']
  %s0 = inlined_call_operand.hbm [shape: bf16[16,32], index: 0, kind: input, shape index: {}, may-alias: {0,5}]
  %s1 = inlined_call_operand.hbm [shape: bf16[32,64], index: 1, kind: input, shape index: {}]
  %s2 = inlined_call_operand.hbm [shape: f32[1,64], index: 2, kind: input, shape index: {}]
  %s3 = inlined_call_operand.hbm [shape: bf16[64,32], index: 3, kind: input, shape index: {}]
  %s4 = inlined_call_operand.hbm [shape: f32[1,32], index: 4, kind: input, shape index: {}]
  %s5 = inlined_call_operand.hbm [shape: bf16[16,32], index: 5, kind: input, shape index: {}, may-alias: {0,5}]
  %s6 = inlined_call_operand.hbm [shape: f32[1,32], index: 6, kind: input, shape index: {}]
  %s7 = inlined_call_operand.hbm [shape: f32[1,32], index: 7, kind: input, shape index: {}]
  %s8 = inlined_call_operand.hbm [shape: bf16[16,32], index: 8, kind: output, shape index: {}]
  %s9 = sld [smem:[#allocation0]]
  $region82: #{transformer_forward.13} parent=0
    _
  %s11 = ssub.s32 1, %s9
  %s12 = scalar_select 0, %s11, %s9
  $region1: #{transformer_forward.13} parent=0
    #allocation3 [shape = 'u8[4096]{0}', space=vmem, size = 0x1000, scoped, tag = 'input window, operand 0, single buffered']
    #allocation4 [shape = 's32[1]{0}', space=sflag, size = 0x4, scoped, tag = 'scoped memory for transformer_forward.13']
    #allocation5 [shape = 's32[1]{0}', space=sflag, size = 0x4, scoped, tag = 'scoped memory for transformer_forward.13']
    #allocation6 [shape = 'u8[8192]{0}', space=vmem, size = 0x2000, scoped, tag = 'input window, operand 1, single buffered']
    #allocation7 [shape = 's32[1]{0}', space=sflag, size = 0x4, scoped, tag = 'scoped memory for transformer_forward.13']
    #allocation8 [shape = 'u8[512]{0}', space=vmem, size = 0x400, scoped, tag = 'input window, operand 2, single buffered']
    #allocation9 [shape = 'u8[16384]{0}', space=vmem, size = 0x4000, scoped, tag = 'input window, operand 3, single buffered']
    #allocation10 [shape = 's32[1]{0}', space=sflag, size = 0x4, scoped, tag = 'scoped memory for transformer_forward.13']
    #allocation11 [shape = 'u8[512]{0}', space=vmem, size = 0x400, scoped, tag = 'input window, operand 4, single buffered']
    #allocation12 [shape = 'u8[4096]{0}', space=vmem, size = 0x1000, scoped, tag = 'input window, operand 5, single buffered']
    #allocation13 [shape = 's32[1]{0}', space=sflag, size = 0x4, scoped, tag = 'scoped memory for transformer_forward.13']
    #allocation14 [shape = 'u8[512]{0}', space=vmem, size = 0x400, scoped, tag = 'input window, operand 6, single buffered']
    #allocation15 [shape = 'u8[512]{0}', space=vmem, size = 0x400, scoped, tag = 'input window, operand 7, single buffered']
    #allocation16 [shape = 's32[1]{0}', space=sflag, size = 0x4, scoped, tag = 'scoped memory for transformer_forward.13']
    #allocation17 [shape = 'u8[4096]{0}', space=vmem, size = 0x1000, scoped, tag = 'output window, operand 0, single buffered']
    %13 = vsyncpa [#allocation4], 0
    %14 = vsyncpa [#allocation7], 0
    %15 = vsyncpa [#allocation10], 0
    %16 = vsyncpa [#allocation13], 0
    %17 = vsyncpa [#allocation16], 0
    %18 = vsyncpa [#allocation5], 0
    // Predicated region
    $region2: #{transformer_forward.13} parent=1 // pred_check
      _
    $region3: #{transformer_forward.13} parent=1 // pred_check_branch
      %20 = sbr.rel (0) target = $region5
    $region4: #{transformer_forward.13} parent=1 // pred_region
      %s22 = ssub.s32 128, 128
      %23 = vsyncadd [#allocation4], %s22
      %s24 = sshll.u32 [#allocation3], 4
      %s25 = int_to_ptr.vmem [resolvable:$true] %s24
      %30 = dma.hbm_to_vmem [thread:$0]  %s0, 128, %s25, [#allocation4], 64, 64, 4
    $region5: #{transformer_forward.13} parent=1 // pred_fallthru
      _
    // Predicated region
    $region6: #{transformer_forward.13} parent=1 // pred_check
      _
    $region7: #{transformer_forward.13} parent=1 // pred_check_branch
      %32 = sbr.rel (0) target = $region9
    $region8: #{transformer_forward.13} parent=1 // pred_region
      %s34 = ssub.s32 256, 256
      %35 = vsyncadd [#allocation7], %s34
      %s36 = sshll.u32 [#allocation6], 4
      %s37 = int_to_ptr.vmem [resolvable:$true] %s36
      %42 = dma.hbm_to_vmem [thread:$0]  %s1, 256, %s37, [#allocation7], 64, 64, 4
    $region9: #{transformer_forward.13} parent=1 // pred_fallthru
      _
    // Predicated region
    $region10: #{transformer_forward.13} parent=1 // pred_check
      _
    $region11: #{transformer_forward.13} parent=1 // pred_check_branch
      %44 = sbr.rel (0) target = $region13
    $region12: #{transformer_forward.13} parent=1 // pred_region
      %s46 = ssub.s32 16, 16
      %47 = vsyncadd [#allocation7], %s46
      %s49 = sshll.u32 [#allocation8], 4
      %s50 = int_to_ptr.vmem [resolvable:$true] %s49
      %52 = dma.hbm_to_vmem [thread:$0]  %s2, 16, %s50, [#allocation7]
    $region13: #{transformer_forward.13} parent=1 // pred_fallthru
      _
    // Predicated region
    $region14: #{transformer_forward.13} parent=1 // pred_check
      _
    $region15: #{transformer_forward.13} parent=1 // pred_check_branch
      %54 = sbr.rel (0) target = $region17
    $region16: #{transformer_forward.13} parent=1 // pred_region
      %s56 = ssub.s32 512, 512
      %57 = vsyncadd [#allocation10], %s56
      %s58 = sshll.u32 [#allocation9], 4
      %s59 = int_to_ptr.vmem [resolvable:$true] %s58
      %64 = dma.hbm_to_vmem [thread:$0]  %s3, 512, %s59, [#allocation10], 64, 64, 4
    $region17: #{transformer_forward.13} parent=1 // pred_fallthru
      _
    // Predicated region
    $region18: #{transformer_forward.13} parent=1 // pred_check
      _
    $region19: #{transformer_forward.13} parent=1 // pred_check_branch
      %66 = sbr.rel (0) target = $region21
    $region20: #{transformer_forward.13} parent=1 // pred_region
      %s68 = ssub.s32 16, 16
      %69 = vsyncadd [#allocation10], %s68
      %s71 = sshll.u32 [#allocation11], 4
      %s72 = int_to_ptr.vmem [resolvable:$true] %s71
      %74 = dma.hbm_to_vmem [thread:$0]  %s4, 16, %s72, [#allocation10]
    $region21: #{transformer_forward.13} parent=1 // pred_fallthru
      _
    // Predicated region
    $region22: #{transformer_forward.13} parent=1 // pred_check
      _
    $region23: #{transformer_forward.13} parent=1 // pred_check_branch
      %76 = sbr.rel (0) target = $region25
    $region24: #{transformer_forward.13} parent=1 // pred_region
      %s78 = ssub.s32 128, 128
      %79 = vsyncadd [#allocation13], %s78
      %s80 = sshll.u32 [#allocation12], 4
      %s81 = int_to_ptr.vmem [resolvable:$true] %s80
      %86 = dma.hbm_to_vmem [thread:$0]  %s5, 128, %s81, [#allocation13], 64, 64, 4
    $region25: #{transformer_forward.13} parent=1 // pred_fallthru
      _
    // Predicated region
    $region26: #{transformer_forward.13} parent=1 // pred_check
      _
    $region27: #{transformer_forward.13} parent=1 // pred_check_branch
      %88 = sbr.rel (0) target = $region29
    $region28: #{transformer_forward.13} parent=1 // pred_region
      %s90 = ssub.s32 16, 16
      %91 = vsyncadd [#allocation13], %s90
      %s93 = sshll.u32 [#allocation14], 4
      %s94 = int_to_ptr.vmem [resolvable:$true] %s93
      %96 = dma.hbm_to_vmem [thread:$0]  %s6, 16, %s94, [#allocation13]
    $region29: #{transformer_forward.13} parent=1 // pred_fallthru
      _
    // Predicated region
    $region30: #{transformer_forward.13} parent=1 // pred_check
      _
    $region31: #{transformer_forward.13} parent=1 // pred_check_branch
      %98 = sbr.rel (0) target = $region33
    $region32: #{transformer_forward.13} parent=1 // pred_region
      %s100 = ssub.s32 16, 16
      %101 = vsyncadd [#allocation16], %s100
      %s103 = sshll.u32 [#allocation15], 4
      %s104 = int_to_ptr.vmem [resolvable:$true] %s103
      %106 = dma.hbm_to_vmem [thread:$0]  %s7, 16, %s104, [#allocation16]
    $region33: #{transformer_forward.13} parent=1 // pred_fallthru
      _
    // Predicated region
    $region34: #{transformer_forward.13} parent=1 // pred_check
      _
    $region35: #{transformer_forward.13} parent=1 // pred_check_branch
      %108 = sbr.rel (0) target = $region37
    $region36: #{transformer_forward.13} parent=1 // pred_region
      %109 = dma.done [#allocation4], 128
    $region37: #{transformer_forward.13} parent=1 // pred_fallthru
      _
    // Predicated region
    $region38: #{transformer_forward.13} parent=1 // pred_check
      _
    $region39: #{transformer_forward.13} parent=1 // pred_check_branch
      %111 = sbr.rel (0) target = $region41
    $region40: #{transformer_forward.13} parent=1 // pred_region
      %112 = dma.done [#allocation7], 256
    $region41: #{transformer_forward.13} parent=1 // pred_fallthru
      _
    // Predicated region
    $region42: #{transformer_forward.13} parent=1 // pred_check
      _
    $region43: #{transformer_forward.13} parent=1 // pred_check_branch
      %114 = sbr.rel (0) target = $region45
    $region44: #{transformer_forward.13} parent=1 // pred_region
      %115 = dma.done [#allocation7], 16
    $region45: #{transformer_forward.13} parent=1 // pred_fallthru
      _
    // Predicated region
    $region46: #{transformer_forward.13} parent=1 // pred_check
      _
    $region47: #{transformer_forward.13} parent=1 // pred_check_branch
      %117 = sbr.rel (0) target = $region49
    $region48: #{transformer_forward.13} parent=1 // pred_region
      %118 = dma.done [#allocation10], 512
    $region49: #{transformer_forward.13} parent=1 // pred_fallthru
      _
    // Predicated region
    $region50: #{transformer_forward.13} parent=1 // pred_check
      _
    $region51: #{transformer_forward.13} parent=1 // pred_check_branch
      %120 = sbr.rel (0) target = $region53
    $region52: #{transformer_forward.13} parent=1 // pred_region
      %121 = dma.done [#allocation10], 16
    $region53: #{transformer_forward.13} parent=1 // pred_fallthru
      _
    // Predicated region
    $region54: #{transformer_forward.13} parent=1 // pred_check
      _
    $region55: #{transformer_forward.13} parent=1 // pred_check_branch
      %123 = sbr.rel (0) target = $region57
    $region56: #{transformer_forward.13} parent=1 // pred_region
      %124 = dma.done [#allocation13], 128
    $region57: #{transformer_forward.13} parent=1 // pred_fallthru
      _
    // Predicated region
    $region58: #{transformer_forward.13} parent=1 // pred_check
      _
    $region59: #{transformer_forward.13} parent=1 // pred_check_branch
      %126 = sbr.rel (0) target = $region61
    $region60: #{transformer_forward.13} parent=1 // pred_region
      %127 = dma.done [#allocation13], 16
    $region61: #{transformer_forward.13} parent=1 // pred_fallthru
      _
    // Predicated region
    $region62: #{transformer_forward.13} parent=1 // pred_check
      _
    $region63: #{transformer_forward.13} parent=1 // pred_check_branch
      %129 = sbr.rel (0) target = $region65
    $region64: #{transformer_forward.13} parent=1 // pred_region
      %130 = dma.done [#allocation16], 16
    $region65: #{transformer_forward.13} parent=1 // pred_fallthru
      _
    %p132 = scmp.eq.s32.totalorder 0, 0
    // Predicated region
    $region66: #{transformer_forward.13} parent=1 // pred_check
      %p133 = pneg %p132
    $region67: #{transformer_forward.13} parent=1 // pred_check_branch
      %135 = sbr.rel (%p133) target = $region69
    $region68: #{transformer_forward.13} parent=1 // pred_region
      %vm136 = vcmask 261120
      %137 = vst.msk [vmem:[#allocation2] sm:$0xff] %vm136, 0.0
      %138 = vst.msk [vmem:[#allocation2 + $0x8] sm:$0xff] %vm136, 0.0
    $region69: #{transformer_forward.13} parent=1 // pred_fallthru
      _
    %v139 = vld [vmem:[#allocation3] sm:$0xf]
    %v140 = vld [vmem:[#allocation3 + $0x4] sm:$0xf]
    %v141 = vld [vmem:[#allocation6] sm:$0xf]
    %v142 = vld [vmem:[#allocation6 + $0x4] sm:$0xf]
    %v143 = vld [vmem:[#allocation6 + $0x8] sm:$0xf]
    %v144 = vld [vmem:[#allocation6 + $0xc] sm:$0xf]
    %v145 = vld [vmem:[#allocation8] sm:$0x1]
    %v147 = vlaneseq
    %v148 = vshrl.u32 %v147, 7
    %v149 = vsub.s32 0, %v148
    %v150 = vrot.slane %v145, %v149
    %v154 = vunpack.c.l.b16 %v139
    %v155 = vunpack.c.l.b16 %v140
    %v156 = vpack.c.b16 %v155, %v154
    %v161 = vunpack.c.l.b16 %v141
    %v162 = vunpack.c.l.b16 %v142
    %v163 = vunpack.c.l.b16 %v143
    %v164 = vunpack.c.l.b16 %v144
    %v165 = vpack.c.b16 %v162, %v161
    %v166 = vpack.c.b16 %v164, %v163
    %vm169 = vcmask 261120
    %v171 = vsel %vm169, %v156, 0
    %173 = vmatprep.subr.bf16.mxu0 0
    %174 = vmatpush1.bf16.msra.mxu0 %v165
    %175 = vmatprep.subr.bf16.mxu0 0
    %176 = vmatpush1.bf16.msra.mxu0 %v166
    %177 = vmatprep.subr.bf16.mxu0 0
    %178 = vmatpush1.bf16.msra.mxu0 0
    %179 = vmatprep.subr.bf16.mxu0 0
    %180 = vmatpush1.bf16.msra.mxu0 0
    %181 = vmatprep.subr.bf16.mxu0 0
    %182 = vmatpush1.bf16.msra.mxu0 0
    %183 = vmatprep.subr.bf16.mxu0 0
    %184 = vmatpush1.bf16.msra.mxu0 0
    %185 = vmatprep.subr.bf16.mxu0 0
    %186 = vmatpush1.bf16.msra.mxu0 0
    %187 = vmatprep.subr.bf16.mxu0 0
    %188 = vmatpush1.bf16.msra.mxu0 0
    %189 = vmatprep.subr.bf16.mxu0 0
    %190 = vmatpush1.bf16.msra.mxu0 0
    %191 = vmatprep.subr.bf16.mxu0 0
    %192 = vmatpush1.bf16.msra.mxu0 0
    %193 = vmatprep.subr.bf16.mxu0 0
    %194 = vmatpush1.bf16.msra.mxu0 0
    %195 = vmatprep.subr.bf16.mxu0 0
    %196 = vmatpush1.bf16.msra.mxu0 0
    %197 = vmatprep.subr.bf16.mxu0 0
    %198 = vmatpush1.bf16.msra.mxu0 0
    %199 = vmatprep.subr.bf16.mxu0 0
    %200 = vmatpush1.bf16.msra.mxu0 0
    %201 = vmatprep.subr.bf16.mxu0 0
    %202 = vmatpush1.bf16.msra.mxu0 0
    %203 = vmatprep.subr.bf16.mxu0 0
    %204 = vmatpush1.bf16.msra.mxu0 0
    %205 = vmatprep.mubr.bf16.mxu0 0
    %206 = vmatmul.mubr.bf16.gmra.mrb[0].mxu0 %v171
    %v207 = vpop.f32.mrb[0].mxu0
    %v208 = vadd.f32 %v150, %v207
    %v209 = vpop.f32.mrb[0].mxu0
    %v210 = vpop.f32.mrb[0].mxu0
    %v211 = vadd.f32 %v150, %v210
    %v212 = vpop.f32.mrb[0].mxu0
    %213 = vdwg.mxu0
    %v214 = vmul.f32 %v208, 0.5
    %v215 = vmul.f32 %v211, 0.5
    %v216 = vmul.f32 %v208, 0.044715
    %v217 = vmul.f32 %v211, 0.044715
    %v218 = vmul.f32 %v216, %v208
    %v219 = vmul.f32 %v217, %v211
    %v220 = vmul.f32 %v218, %v208
    %v221 = vmul.f32 %v219, %v211
    %v222 = vadd.f32 %v208, %v220
    %v223 = vadd.f32 %v211, %v221
    %v224 = vmul.f32 %v222, 0.7978846
    %v225 = vmul.f32 %v223, 0.7978846
    %v226 = vtanh.pop %v224
    %v227 = vtanh.pop %v225
    %v228 = vadd.f32 %v226, 1.0
    %v229 = vadd.f32 %v227, 1.0
    %v230 = vmul.f32 %v214, %v228
    %v231 = vmul.f32 %v215, %v229
    %v232 = vld [vmem:[#allocation2] sm:$0xff]
    %v233 = vld [vmem:[#allocation2 + $0x8] sm:$0xff]
    %v234 = vpack.c.bf16 %v231, %v230
    %v235 = vld [vmem:[#allocation9] sm:$0xf]
    %v236 = vld [vmem:[#allocation9 + $0x4] sm:$0xf]
    %v237 = vld [vmem:[#allocation9 + $0x8] sm:$0xf]
    %v238 = vld [vmem:[#allocation9 + $0xc] sm:$0xf]
    %v239 = vld [vmem:[#allocation9 + $0x10] sm:$0xf]
    %v240 = vld [vmem:[#allocation9 + $0x14] sm:$0xf]
    %v241 = vld [vmem:[#allocation9 + $0x18] sm:$0xf]
    %v242 = vld [vmem:[#allocation9 + $0x1c] sm:$0xf]
    %v251 = vunpack.c.l.b16 %v235
    %v252 = vunpack.c.l.b16 %v236
    %v253 = vunpack.c.l.b16 %v237
    %v254 = vunpack.c.l.b16 %v238
    %v255 = vunpack.c.l.b16 %v239
    %v256 = vunpack.c.l.b16 %v240
    %v257 = vunpack.c.l.b16 %v241
    %v258 = vunpack.c.l.b16 %v242
    %v259 = vpack.c.b16 %v252, %v251
    %v260 = vpack.c.b16 %v254, %v253
    %v261 = vpack.c.b16 %v256, %v255
    %v262 = vpack.c.b16 %v258, %v257
    %vm267 = vcmask 523264
    %v269 = vsel %vm267, %v234, 0
    %271 = vmatprep.subr.bf16.mxu0 0
    %272 = vmatpush1.bf16.msra.mxu0 %v259
    %273 = vmatprep.subr.bf16.mxu0 0
    %274 = vmatpush1.bf16.msra.mxu0 %v260
    %275 = vmatprep.subr.bf16.mxu0 0
    %276 = vmatpush1.bf16.msra.mxu0 %v261
    %277 = vmatprep.subr.bf16.mxu0 0
    %278 = vmatpush1.bf16.msra.mxu0 %v262
    %279 = vmatprep.subr.bf16.mxu0 0
    %280 = vmatpush1.bf16.msra.mxu0 0
    %281 = vmatprep.subr.bf16.mxu0 0
    %282 = vmatpush1.bf16.msra.mxu0 0
    %283 = vmatprep.subr.bf16.mxu0 0
    %284 = vmatpush1.bf16.msra.mxu0 0
    %285 = vmatprep.subr.bf16.mxu0 0
    %286 = vmatpush1.bf16.msra.mxu0 0
    %287 = vmatprep.subr.bf16.mxu0 0
    %288 = vmatpush1.bf16.msra.mxu0 0
    %289 = vmatprep.subr.bf16.mxu0 0
    %290 = vmatpush1.bf16.msra.mxu0 0
    %291 = vmatprep.subr.bf16.mxu0 0
    %292 = vmatpush1.bf16.msra.mxu0 0
    %293 = vmatprep.subr.bf16.mxu0 0
    %294 = vmatpush1.bf16.msra.mxu0 0
    %295 = vmatprep.subr.bf16.mxu0 0
    %296 = vmatpush1.bf16.msra.mxu0 0
    %297 = vmatprep.subr.bf16.mxu0 0
    %298 = vmatpush1.bf16.msra.mxu0 0
    %299 = vmatprep.subr.bf16.mxu0 0
    %300 = vmatpush1.bf16.msra.mxu0 0
    %301 = vmatprep.subr.bf16.mxu0 0
    %302 = vmatpush1.bf16.msra.mxu0 0
    %303 = vmatprep.mubr.bf16.mxu0 0
    %304 = vmatmul.mubr.bf16.gmra.mrb[0].mxu0 %v269
    %v305 = vpop.f32.mrb[0].mxu0
    %v306 = vadd.f32 0.0, %v305
    %v307 = vpop.f32.mrb[0].mxu0
    %v308 = vpop.f32.mrb[0].mxu0
    %v309 = vadd.f32 0.0, %v308
    %v310 = vpop.f32.mrb[0].mxu0
    %311 = vdwg.mxu0
    %v312 = vadd.f32 %v232, %v306
    %v313 = vadd.f32 %v233, %v309
    %314 = vst.msk [vmem:[#allocation2] sm:$0xff] %vm169, %v312
    %315 = vst.msk [vmem:[#allocation2 + $0x8] sm:$0xff] %vm169, %v313
    // Predicated region
    $region70: #{transformer_forward.13} parent=1 // pred_check
      %p316 = pneg %p132
    $region71: #{transformer_forward.13} parent=1 // pred_check_branch
      %318 = sbr.rel (%p316) target = $region73
    $region72: #{transformer_forward.13} parent=1 // pred_region
      %v319 = vld [vmem:[#allocation2] sm:$0xff]
      %v320 = vld [vmem:[#allocation2 + $0x8] sm:$0xff]
      %v321 = vld [vmem:[#allocation11] sm:$0x1]
      %v323 = vlaneseq
      %v324 = vshrl.u32 %v323, 7
      %v325 = vsub.s32 0, %v324
      %v326 = vrot.slane %v321, %v325
      %v328 = vadd.f32 %v319, %v326
      %v329 = vadd.f32 %v320, %v326
      %v330 = vld [vmem:[#allocation12] sm:$0xf]
      %v331 = vld [vmem:[#allocation12 + $0x4] sm:$0xf]
      %v332 = vunpack.c.l.bf16 %v330
      %v333 = vunpack.c.l.bf16 %v331
      %v334 = vadd.f32 %v328, %v332
      %v335 = vadd.f32 %v329, %v333
      %v336 = vsel %vm169, %v334, 0.0
      %337 = vadd.xlane.f32.xlu0 %v336
      %v338 = vpop.xlane.xlu0 %337
      %v339 = vsel %vm169, %v335, 0.0
      %340 = vadd.xlane.f32.xlu0 %v339
      %v341 = vpop.xlane.xlu0 %340
      %v342 = vrcp.pop 32.0
      %v343 = vmul.f32 %v338, %v342
      %v344 = vmul.f32 %v341, %v342
      %v345 = vsub.f32 %v334, %v343
      %v346 = vsub.f32 %v335, %v344
      %v347 = vmul.f32 %v345, %v345
      %v348 = vmul.f32 %v346, %v346
      %v349 = vsel %vm169, %v347, 0.0
      %350 = vadd.xlane.f32.xlu0 %v349
      %v351 = vpop.xlane.xlu0 %350
      %v352 = vsel %vm169, %v348, 0.0
      %353 = vadd.xlane.f32.xlu0 %v352
      %v354 = vpop.xlane.xlu0 %353
      %v355 = vmul.f32 %v351, %v342
      %v356 = vmul.f32 %v354, %v342
      %v357 = vadd.f32 %v355, 1e-12
      %v358 = vadd.f32 %v356, 1e-12
      %v359 = vrsqrt.pop %v357
      %v360 = vrsqrt.pop %v358
      %v361 = vmul.f32 %v345, %v359
      %v362 = vmul.f32 %v346, %v360
      %v363 = vld [vmem:[#allocation14] sm:$0x1]
      %v365 = vlaneseq
      %v366 = vshrl.u32 %v365, 7
      %v367 = vsub.s32 0, %v366
      %v368 = vrot.slane %v363, %v367
      %v370 = vmul.f32 %v361, %v368
      %v371 = vmul.f32 %v362, %v368
      %v372 = vld [vmem:[#allocation15] sm:$0x1]
      %v374 = vlaneseq
      %v375 = vshrl.u32 %v374, 7
      %v376 = vsub.s32 0, %v375
      %v377 = vrot.slane %v372, %v376
      %v379 = vadd.f32 %v370, %v377
      %v380 = vadd.f32 %v371, %v377
      %v381 = vpack.c.bf16 %v380, %v379
      %v383 = vunpack.c.l.b16 %v381
      %v384 = vunpack.c.h.b16 %v381
      %v385 = vpack.c.b16 %v383, %v383
      %v386 = vpack.c.b16 %v384, %v384
      %vm389 = vcmask 257024
      %390 = vst.msk [vmem:[#allocation17] sm:$0xf] %vm389, %v385
      %391 = vst.msk [vmem:[#allocation17 + $0x4] sm:$0xf] %vm389, %v386
    $region73: #{transformer_forward.13} parent=1 // pred_fallthru
      _
    // Predicated region
    $region74: #{transformer_forward.13} parent=1 // pred_check
      _
    $region75: #{transformer_forward.13} parent=1 // pred_check_branch
      %393 = sbr.rel (0) target = $region77
    $region76: #{transformer_forward.13} parent=1 // pred_region
      %s395 = ssub.s32 128, 128
      %396 = vsyncadd [#allocation5], %s395
      %s397 = sshll.u32 [#allocation17], 4
      %s398 = int_to_ptr.vmem [resolvable:$true] %s397
      %403 = dma.vmem_to_hbm [thread:$0]  %s398, 128, %s8, [#allocation5], 64, 64, 4
    $region77: #{transformer_forward.13} parent=1 // pred_fallthru
      _
    // Predicated region
    $region78: #{transformer_forward.13} parent=1 // pred_check
      _
    $region79: #{transformer_forward.13} parent=1 // pred_check_branch
      %405 = sbr.rel (0) target = $region81
    $region80: #{transformer_forward.13} parent=1 // pred_region
      %406 = dma.done [#allocation5], 128
    $region81: #{transformer_forward.13} parent=1 // pred_fallthru
      _
    %407 = vsyncpa [#allocation4], 1
    %408 = vsyncpa [#allocation7], 1
    %409 = vsyncpa [#allocation10], 1
    %410 = vsyncpa [#allocation13], 1
    %411 = vsyncpa [#allocation16], 1
    %412 = vsyncpa [#allocation5], 1

</llo_original>
